<compile_context>
chip_gen: v5e
topology: v5e:2x2
jax: 0.10.0
libtpu: 0.0.40
codegen_flags: <defaults>
</compile_context>

<pallas_src>
import jax
import jax.numpy as jnp
from jax.experimental import pallas as pl
from jax.experimental.pallas import tpu as pltpu


# ----------------------------------------------------------------------------
# helpers
# ----------------------------------------------------------------------------
def _pick_time_block(seq_len, batch, cap=32):
    """Largest divisor of seq_len <= cap whose row block (t_blk*B) is 8-aligned."""
    for d in range(min(seq_len, cap), 0, -1):
        if seq_len % d == 0 and ((d * batch) % 8 == 0 or d == seq_len):
            return d
    return seq_len


def _pick_seq_tile(seq_len, cap=256):
    if seq_len <= cap:
        return seq_len
    for d in range(cap, 0, -1):
        if seq_len % d == 0 and d % 8 == 0:
            return d
    return seq_len


# ----------------------------------------------------------------------------
# Fused bidirectional LSTM kernel.
# Grid axis = time block.  h/c for both directions live in VMEM scratch and
# persist across grid steps.  Each grid step:
#   1. one (T_blk*B, E) x (E, 4H) MXU matmul per direction (input projection,
#      bias folded in) -- hoisted out of the recurrence,
#   2. a short unrolled loop over T_blk doing only gates = gx[t] + h @ W_hh.
# ----------------------------------------------------------------------------
def _bilstm_kernel(xf_ref, xb_ref, w_ih_ref, w_hh_ref, b_ref,
                   of_ref, ob_ref, hf_scr, cf_scr, hb_scr, cb_scr):
    t = pl.program_id(0)

    @pl.when(t == 0)
    def _():
        hf_scr[...] = jnp.zeros_like(hf_scr)
        cf_scr[...] = jnp.zeros_like(cf_scr)
        hb_scr[...] = jnp.zeros_like(hb_scr)
        cb_scr[...] = jnp.zeros_like(cb_scr)

    B, H = hf_scr.shape
    T = of_ref.shape[0]

    # ---- hoisted input projection (+ bias) for the whole time block (MXU) ----
    gx_f = jnp.dot(xf_ref[...], w_ih_ref[0],
                   preferred_element_type=jnp.float32) + b_ref[0]   # (T*B, 4H)
    gx_b = jnp.dot(xb_ref[...], w_ih_ref[1],
                   preferred_element_type=jnp.float32) + b_ref[1]   # (T*B, 4H)

    w_hh_f = w_hh_ref[0]
    w_hh_b = w_hh_ref[1]

    def cell(g, c_prev):
        # PyTorch gate order: i, f, g, o
        i = jax.nn.sigmoid(g[:, 0 * H:1 * H])
        f = jax.nn.sigmoid(g[:, 1 * H:2 * H])
        gg = jnp.tanh(g[:, 2 * H:3 * H])
        o = jax.nn.sigmoid(g[:, 3 * H:4 * H])
        c = f * c_prev + i * gg
        h = o * jnp.tanh(c)
        return h, c

    # ---- sequential recurrence: only h @ W_hh remains per step ----
    for tt in range(T):
        # forward direction (block times in increasing order)
        g_f = gx_f[tt * B:(tt + 1) * B] + jnp.dot(
            hf_scr[...].astype(jnp.bfloat16), w_hh_f,
            preferred_element_type=jnp.float32)
        h_f, c_f = cell(g_f, cf_scr[...])
        hf_scr[...] = h_f
        cf_scr[...] = c_f
        of_ref[tt] = h_f

        # backward direction (block times in decreasing order)
        rt = T - 1 - tt
        g_b = gx_b[rt * B:(rt + 1) * B] + jnp.dot(
            hb_scr[...].astype(jnp.bfloat16), w_hh_b,
            preferred_element_type=jnp.float32)
        h_b, c_b = cell(g_b, cb_scr[...])
        hb_scr[...] = h_b
        cb_scr[...] = c_b
        ob_ref[rt] = h_b


def bilstm(embed, w_ih, w_hh, bias, *, time_block=32):
    """embed: (S, B, E) bf16.  Returns (h_fwd, h_bwd) each (S, B, H) f32 with
    hidden states stored at their original time positions (PyTorch convention)."""
    S, B, E = embed.shape
    H = w_hh.shape[1]
    t_blk = _pick_time_block(S, B, time_block)
    n_blk = S // t_blk
    rows = t_blk * B

    embed_flat = embed.reshape(S * B, E)   # time-major rows: row = s*B + b

    fwd_rows = lambda t: (t, 0)
    bwd_rows = lambda t: (n_blk - 1 - t, 0)
    fwd_out = lambda t: (t, 0, 0)
    bwd_out = lambda t: (n_blk - 1 - t, 0, 0)
    const3 = lambda t: (0, 0, 0)

    out_f, out_b = pl.pallas_call(
        _bilstm_kernel,
        out_shape=(jax.ShapeDtypeStruct((S, B, H), jnp.float32),
                   jax.ShapeDtypeStruct((S, B, H), jnp.float32)),
        grid=(n_blk,),
        in_specs=[
            pl.BlockSpec((rows, E), fwd_rows),          # forward time view
            pl.BlockSpec((rows, E), bwd_rows),          # reversed time view
            pl.BlockSpec((2, E, 4 * H), const3),        # stacked W_ih (bf16)
            pl.BlockSpec((2, H, 4 * H), const3),        # stacked W_hh (bf16)
            pl.BlockSpec((2, 1, 4 * H), const3),        # stacked bias (f32)
        ],
        out_specs=[pl.BlockSpec((t_blk, B, H), fwd_out),
                   pl.BlockSpec((t_blk, B, H), bwd_out)],
        scratch_shapes=[
            pltpu.VMEM((B, H), jnp.float32),   # h forward
            pltpu.VMEM((B, H), jnp.float32),   # c forward
            pltpu.VMEM((B, H), jnp.float32),   # h backward
            pltpu.VMEM((B, H), jnp.float32),   # c backward
        ],
        compiler_params=pltpu.CompilerParams(
            dimension_semantics=("arbitrary",),
            vmem_limit_bytes=48 * 1024 * 1024,
        ),
    )(embed_flat, embed_flat, w_ih, w_hh, bias)
    return out_f, out_b


# ----------------------------------------------------------------------------
# Attention pooling + final Linear, gridded over the sequence (online softmax).
# ----------------------------------------------------------------------------
def _attn_fc_kernel(lstm_ref, state_ref, wfc_ref, bfc_ref, out_ref,
                    m_scr, l_scr, acc_scr):
    si = pl.program_id(0)

    @pl.when(si == 0)
    def _():
        m_scr[...] = jnp.full_like(m_scr, -jnp.inf)
        l_scr[...] = jnp.zeros_like(l_scr)
        acc_scr[...] = jnp.zeros_like(acc_scr)

    lstm = lstm_ref[...]     # (B, Ts, 2H) bf16
    state = state_ref[...]   # (B, 1, 2H)  bf16

    # attention scores on the MXU: (B, 1, Ts) -> (B, Ts)
    s = jnp.einsum("bqd,bkd->bqk", state, lstm,
                   preferred_element_type=jnp.float32)[:, 0, :]

    m_prev = m_scr[...]                                            # (B, 1)
    m_new = jnp.maximum(m_prev, jnp.max(s, axis=1, keepdims=True))
    alpha = jnp.exp(m_prev - m_new)                                # (B, 1)
    p = jnp.exp(s - m_new)                                         # (B, Ts)
    l_scr[...] = alpha * l_scr[...] + jnp.sum(p, axis=1, keepdims=True)

    # weighted pooling on the MXU: (B, 1, 2H) -> (B, 2H)
    pooled = jnp.einsum("bqk,bkd->bqd",
                        p[:, None, :].astype(lstm.dtype), lstm,
                        preferred_element_type=jnp.float32)[:, 0, :]
    acc_scr[...] = alpha * acc_scr[...] + pooled
    m_scr[...] = m_new

    @pl.when(si == pl.num_programs(0) - 1)
    def _():
        att = acc_scr[...] * pl.reciprocal(l_scr[...], approx=True)  # (B, 2H)
        out_ref[...] = (
            jnp.dot(att.astype(wfc_ref.dtype), wfc_ref[...],
                    preferred_element_type=jnp.float32) + bfc_ref[...])


def attention_fc(lstm_output, merged_state, fc_w, fc_b, *, seq_tile=256):
    B, S, D = lstm_output.shape
    C = fc_w.shape[0]
    ts = _pick_seq_tile(S, seq_tile)
    n_blk = S // ts

    return pl.pallas_call(
        _attn_fc_kernel,
        out_shape=jax.ShapeDtypeStruct((B, C), jnp.float32),
        grid=(n_blk,),
        in_specs=[
            pl.BlockSpec((B, ts, D), lambda s: (0, s, 0)),
            pl.BlockSpec((B, 1, D), lambda s: (0, 0, 0)),
            pl.BlockSpec((D, C), lambda s: (0, 0)),
            pl.BlockSpec((1, C), lambda s: (0, 0)),
        ],
        out_specs=pl.BlockSpec((B, C), lambda s: (0, 0)),
        scratch_shapes=[
            pltpu.VMEM((B, 1), jnp.float32),   # running max
            pltpu.VMEM((B, 1), jnp.float32),   # running sum
            pltpu.VMEM((B, D), jnp.float32),   # running weighted sum
        ],
        compiler_params=pltpu.CompilerParams(
            dimension_semantics=("arbitrary",),
            vmem_limit_bytes=48 * 1024 * 1024,
        ),
    )(
        lstm_output.astype(jnp.bfloat16),
        merged_state[:, None, :].astype(jnp.bfloat16),
        fc_w.T.astype(jnp.bfloat16),
        fc_b[None, :].astype(jnp.float32),
    )


# ----------------------------------------------------------------------------
# Full forward pass (embedding gather + transposes are JAX glue; the biLSTM and
# attention+fc hot paths are Pallas kernels).
# ----------------------------------------------------------------------------
def rnn_forward(tokens, params, *, time_block=32, seq_tile=256):
    # tokens: (B, S) int32
    x = tokens.T                                          # (S, B) == input.transpose(1, 0)
    embed_tbl = params["embed"].astype(jnp.bfloat16)
    embed = jnp.take(embed_tbl, x, axis=0)                # (S, B, E) bf16

    w_ih = jnp.stack([params["w_ih_f"].T,
                      params["w_ih_b"].T]).astype(jnp.bfloat16)      # (2, E, 4H)
    w_hh = jnp.stack([params["w_hh_f"].T,
                      params["w_hh_b"].T]).astype(jnp.bfloat16)      # (2, H, 4H)
    bias = jnp.stack([
        (params["b_ih_f"] + params["b_hh_f"])[None, :],
        (params["b_ih_b"] + params["b_hh_b"])[None, :],
    ]).astype(jnp.float32)                                           # (2, 1, 4H)

    h_fwd, h_bwd = bilstm(embed, w_ih, w_hh, bias, time_block=time_block)

    lstm_out = jnp.concatenate([h_fwd, h_bwd], axis=-1)              # (S, B, 2H)
    lstm_out = jnp.transpose(lstm_out, (1, 0, 2))                    # (B, S, 2H)
    # PyTorch final hidden: forward at t=S-1, backward at t=0
    merged_state = jnp.concatenate([h_fwd[-1], h_bwd[0]], axis=-1)   # (B, 2H)

    out = attention_fc(lstm_out, merged_state, params["fc_w"], params["fc_b"],
                       seq_tile=seq_tile)
    return {"output": out}


# ----------------------------------------------------------------------------
# Pure-JAX reference (mirrors the kernel's bf16 MXU-operand rounding so we can
# use a tight tolerance; everything else is f32).
# ----------------------------------------------------------------------------
def _q(x):
    return x.astype(jnp.bfloat16).astype(jnp.float32)


def _lstm_ref(embed, w_ih, w_hh, b_ih, b_hh, reverse):
    S, B, E = embed.shape
    H = w_hh.shape[1]
    wih = _q(w_ih.T)
    whh = _q(w_hh.T)
    bias = (b_ih + b_hh)[None, :]
    xq = _q(embed)
    h = jnp.zeros((B, H), jnp.float32)
    c = jnp.zeros((B, H), jnp.float32)
    order = range(S - 1, -1, -1) if reverse else range(S)
    outs = [None] * S
    for t in order:
        g = xq[t] @ wih + _q(h) @ whh + bias
        i = jax.nn.sigmoid(g[:, 0 * H:1 * H])
        f = jax.nn.sigmoid(g[:, 1 * H:2 * H])
        gg = jnp.tanh(g[:, 2 * H:3 * H])
        o = jax.nn.sigmoid(g[:, 3 * H:4 * H])
        c = f * c + i * gg
        h = o * jnp.tanh(c)
        outs[t] = h
    return jnp.stack(outs, axis=0)


def rnn_forward_ref(tokens, params):
    x = tokens.T
    embed = jnp.take(params["embed"], x, axis=0)
    h_fwd = _lstm_ref(embed, params["w_ih_f"], params["w_hh_f"],
                      params["b_ih_f"], params["b_hh_f"], False)
    h_bwd = _lstm_ref(embed, params["w_ih_b"], params["w_hh_b"],
                      params["b_ih_b"], params["b_hh_b"], True)
    lstm_out = jnp.transpose(jnp.concatenate([h_fwd, h_bwd], -1), (1, 0, 2))
    merged = jnp.concatenate([h_fwd[-1], h_bwd[0]], -1)
    lstm_q = _q(lstm_out)
    w = jnp.einsum("bsd,bd->bs", lstm_q, _q(merged))
    p = jax.nn.softmax(w, axis=1)
    att = jnp.einsum("bsd,bs->bd", lstm_q, _q(p))
    return _q(att) @ _q(params["fc_w"].T) + params["fc_b"]


if __name__ == "__main__":
    # Small shapes consistent with the module.
    V, E, H, C = 50, 32, 32, 4   # vocab, embedding, hidden, class_num
    B, S = 2, 8                  # batch, seq

    key = jax.random.PRNGKey(0)
    ks = jax.random.split(key, 12)
    scale = 1.0 / jnp.sqrt(H)
    u = lambda k, shp: jax.random.uniform(k, shp, jnp.float32, -scale, scale)

    params = {
        "embed":  jax.random.normal(ks[0], (V, E), jnp.float32),
        "w_ih_f": u(ks[1], (4 * H, E)),
        "w_hh_f": u(ks[2], (4 * H, H)),
        "b_ih_f": u(ks[3], (4 * H,)),
        "b_hh_f": u(ks[4], (4 * H,)),
        "w_ih_b": u(ks[5], (4 * H, E)),
        "w_hh_b": u(ks[6], (4 * H, H)),
        "b_ih_b": u(ks[7], (4 * H,)),
        "b_hh_b": u(ks[8], (4 * H,)),
        "fc_w":   u(ks[9], (C, 2 * H)),
        "fc_b":   u(ks[10], (C,)),
    }

    tokens = jax.random.randint(ks[11], (B, S), 0, V, dtype=jnp.int32)

    out = rnn_forward(tokens, params)["output"]
    out = jax.block_until_ready(out)

    ref = jax.block_until_ready(rnn_forward_ref(tokens, params))
    assert out.shape == (B, C), out.shape
    assert jnp.allclose(out, ref, atol=1e-2, rtol=1e-2), (out, ref)

    print("KERNEL_OK")
</pallas_src>

<mosaic_0001>
module attributes {stable_mosaic.version = 11 : i64} {
  func.func @_bilstm_kernel(%arg0: i32, %arg1: memref<16x32xbf16, #tpu.memory_space<vmem>>, %arg2: memref<16x32xbf16, #tpu.memory_space<vmem>>, %arg3: memref<2x32x128xbf16, #tpu.memory_space<vmem>>, %arg4: memref<2x32x128xbf16, #tpu.memory_space<vmem>>, %arg5: memref<2x1x128xf32, #tpu.memory_space<vmem>>, %arg6: memref<8x2x32xf32, #tpu.memory_space<vmem>>, %arg7: memref<8x2x32xf32, #tpu.memory_space<vmem>>, %arg8: memref<2x32xf32, #tpu.memory_space<vmem>>, %arg9: memref<2x32xf32, #tpu.memory_space<vmem>>, %arg10: memref<2x32xf32, #tpu.memory_space<vmem>>, %arg11: memref<2x32xf32, #tpu.memory_space<vmem>>) attributes {dimension_semantics = [#tpu.dimension_semantics<arbitrary>], iteration_bounds = array<i64: 1>, scalar_prefetch = 0 : i64, scratch_operands = 4 : i64, tpu.core_type = #tpu.core_type<tc>, window_params = [{transform_indices = @transform_0, window_bounds = array<i64: 16, 32>}, {transform_indices = @transform_1, window_bounds = array<i64: 16, 32>}, {pipeline_mode = #tpu.pipeline_mode<synchronous>, transform_indices = @transform_2, window_bounds = array<i64: 2, 32, 128>}, {pipeline_mode = #tpu.pipeline_mode<synchronous>, transform_indices = @transform_3, window_bounds = array<i64: 2, 32, 128>}, {pipeline_mode = #tpu.pipeline_mode<synchronous>, transform_indices = @transform_4, window_bounds = array<i64: 2, 1, 128>}, {transform_indices = @transform_5, window_bounds = array<i64: 8, 2, 32>}, {transform_indices = @transform_6, window_bounds = array<i64: 8, 2, 32>}]} {
    %c0_i32 = arith.constant 0 : i32
    %0 = arith.cmpi eq, %arg0, %c0_i32 : i32
    %1 = arith.extui %0 : i1 to i32
    %c0_i32_0 = arith.constant 0 : i32
    %2 = arith.cmpi ne, %1, %c0_i32_0 : i32
    scf.if %2 {
      %cst_256 = arith.constant 0.000000e+00 : f32
      %599 = vector.broadcast %cst_256 : f32 to vector<2x32xf32>
      %c0_257 = arith.constant 0 : index
      %c0_258 = arith.constant 0 : index
      %600 = vector.load %arg8[%c0_257, %c0_258] : memref<2x32xf32, #tpu.memory_space<vmem>>, vector<2x32xf32>
      tpu.vector_store %arg8[%c0_257, %c0_258], %599 {strides = array<i32>} : memref<2x32xf32, #tpu.memory_space<vmem>>, vector<2x32xf32>,
      %cst_259 = arith.constant 0.000000e+00 : f32
      %601 = vector.broadcast %cst_259 : f32 to vector<2x32xf32>
      %c0_260 = arith.constant 0 : index
      %c0_261 = arith.constant 0 : index
      %602 = vector.load %arg9[%c0_260, %c0_261] : memref<2x32xf32, #tpu.memory_space<vmem>>, vector<2x32xf32>
      tpu.vector_store %arg9[%c0_260, %c0_261], %601 {strides = array<i32>} : memref<2x32xf32, #tpu.memory_space<vmem>>, vector<2x32xf32>,
      %cst_262 = arith.constant 0.000000e+00 : f32
      %603 = vector.broadcast %cst_262 : f32 to vector<2x32xf32>
      %c0_263 = arith.constant 0 : index
      %c0_264 = arith.constant 0 : index
      %604 = vector.load %arg10[%c0_263, %c0_264] : memref<2x32xf32, #tpu.memory_space<vmem>>, vector<2x32xf32>
      tpu.vector_store %arg10[%c0_263, %c0_264], %603 {strides = array<i32>} : memref<2x32xf32, #tpu.memory_space<vmem>>, vector<2x32xf32>,
      %cst_265 = arith.constant 0.000000e+00 : f32
      %605 = vector.broadcast %cst_265 : f32 to vector<2x32xf32>
      %c0_266 = arith.constant 0 : index
      %c0_267 = arith.constant 0 : index
      %606 = vector.load %arg11[%c0_266, %c0_267] : memref<2x32xf32, #tpu.memory_space<vmem>>, vector<2x32xf32>
      tpu.vector_store %arg11[%c0_266, %c0_267], %605 {strides = array<i32>} : memref<2x32xf32, #tpu.memory_space<vmem>>, vector<2x32xf32>,
    } else {
    }
    %c0 = arith.constant 0 : index
    %c0_1 = arith.constant 0 : index
    %3 = vector.load %arg1[%c0, %c0_1] : memref<16x32xbf16, #tpu.memory_space<vmem>>, vector<16x32xbf16>
    %c0_2 = arith.constant 0 : index
    %c0_3 = arith.constant 0 : index
    %c0_4 = arith.constant 0 : index
    %4 = vector.load %arg3[%c0_2, %c0_3, %c0_4] : memref<2x32x128xbf16, #tpu.memory_space<vmem>>, vector<1x32x128xbf16>
    %5 = vector.shape_cast %4 : vector<1x32x128xbf16> to vector<32x128xbf16>
    %cst = arith.constant dense<0.000000e+00> : vector<16x128xf32>
    %6 = tpu.matmul %3, %5, %cst {dimension_numbers = #tpu.dot_dimension_numbers<[1], [0], [0], [1], [0, 0, 1, 1], [], []>} : vector<16x32xbf16>, vector<32x128xbf16>, vector<16x128xf32> -> vector<16x128xf32>
    %c0_5 = arith.constant 0 : index
    %c0_6 = arith.constant 0 : index
    %c0_7 = arith.constant 0 : index
    %7 = vector.load %arg5[%c0_5, %c0_6, %c0_7] : memref<2x1x128xf32, #tpu.memory_space<vmem>>, vector<1x1x128xf32>
    %8 = vector.shape_cast %7 : vector<1x1x128xf32> to vector<1x128xf32>
    %9 = vector.broadcast %8 : vector<1x128xf32> to vector<16x128xf32>
    %10 = arith.addf %6, %9 : vector<16x128xf32>
    %c0_8 = arith.constant 0 : index
    %c0_9 = arith.constant 0 : index
    %11 = vector.load %arg2[%c0_8, %c0_9] : memref<16x32xbf16, #tpu.memory_space<vmem>>, vector<16x32xbf16>
    %c1 = arith.constant 1 : index
    %c0_10 = arith.constant 0 : index
    %c0_11 = arith.constant 0 : index
    %12 = vector.load %arg3[%c1, %c0_10, %c0_11] : memref<2x32x128xbf16, #tpu.memory_space<vmem>>, vector<1x32x128xbf16>
    %13 = vector.shape_cast %12 : vector<1x32x128xbf16> to vector<32x128xbf16>
    %cst_12 = arith.constant dense<0.000000e+00> : vector<16x128xf32>
    %14 = tpu.matmul %11, %13, %cst_12 {dimension_numbers = #tpu.dot_dimension_numbers<[1], [0], [0], [1], [0, 0, 1, 1], [], []>} : vector<16x32xbf16>, vector<32x128xbf16>, vector<16x128xf32> -> vector<16x128xf32>
    %c1_13 = arith.constant 1 : index
    %c0_14 = arith.constant 0 : index
    %c0_15 = arith.constant 0 : index
    %15 = vector.load %arg5[%c1_13, %c0_14, %c0_15] : memref<2x1x128xf32, #tpu.memory_space<vmem>>, vector<1x1x128xf32>
    %16 = vector.shape_cast %15 : vector<1x1x128xf32> to vector<1x128xf32>
    %17 = vector.broadcast %16 : vector<1x128xf32> to vector<16x128xf32>
    %18 = arith.addf %14, %17 : vector<16x128xf32>
    %c0_16 = arith.constant 0 : index
    %c0_17 = arith.constant 0 : index
    %c0_18 = arith.constant 0 : index
    %19 = vector.load %arg4[%c0_16, %c0_17, %c0_18] : memref<2x32x128xbf16, #tpu.memory_space<vmem>>, vector<1x32x128xbf16>
    %20 = vector.shape_cast %19 : vector<1x32x128xbf16> to vector<32x128xbf16>
    %c1_19 = arith.constant 1 : index
    %c0_20 = arith.constant 0 : index
    %c0_21 = arith.constant 0 : index
    %21 = vector.load %arg4[%c1_19, %c0_20, %c0_21] : memref<2x32x128xbf16, #tpu.memory_space<vmem>>, vector<1x32x128xbf16>
    %22 = vector.shape_cast %21 : vector<1x32x128xbf16> to vector<32x128xbf16>
    %23 = vector.extract_strided_slice %10 {offsets = [0, 0], sizes = [2, 128], strides = [1, 1]} : vector<16x128xf32> to vector<2x128xf32>
    %c0_22 = arith.constant 0 : index
    %c0_23 = arith.constant 0 : index
    %24 = vector.load %arg8[%c0_22, %c0_23] : memref<2x32xf32, #tpu.memory_space<vmem>>, vector<2x32xf32>
    %25 = arith.truncf %24 : vector<2x32xf32> to vector<2x32xbf16>
    %cst_24 = arith.constant dense<0.000000e+00> : vector<2x128xf32>
    %26 = tpu.matmul %25, %20, %cst_24 {dimension_numbers = #tpu.dot_dimension_numbers<[1], [0], [0], [1], [0, 0, 1, 1], [], []>} : vector<2x32xbf16>, vector<32x128xbf16>, vector<2x128xf32> -> vector<2x128xf32>
    %27 = arith.addf %23, %26 : vector<2x128xf32>
    %c0_25 = arith.constant 0 : index
    %c0_26 = arith.constant 0 : index
    %28 = vector.load %arg9[%c0_25, %c0_26] : memref<2x32xf32, #tpu.memory_space<vmem>>, vector<2x32xf32>
    %29 = vector.extract_strided_slice %27 {offsets = [0, 0], sizes = [2, 32], strides = [1, 1]} : vector<2x128xf32> to vector<2x32xf32>
    %30 = arith.negf %29 : vector<2x32xf32>
    %31 = math.exp %30 : vector<2x32xf32>
    %cst_27 = arith.constant 1.000000e+00 : f32
    %32 = vector.broadcast %cst_27 : f32 to vector<2x32xf32>
    %33 = arith.addf %32, %31 : vector<2x32xf32>
    %34 = arith.divf %32, %33 : vector<2x32xf32>
    %35 = vector.extract_strided_slice %27 {offsets = [0, 32], sizes = [2, 32], strides = [1, 1]} : vector<2x128xf32> to vector<2x32xf32>
    %36 = arith.negf %35 : vector<2x32xf32>
    %37 = math.exp %36 : vector<2x32xf32>
    %cst_28 = arith.constant 1.000000e+00 : f32
    %38 = vector.broadcast %cst_28 : f32 to vector<2x32xf32>
    %39 = arith.addf %38, %37 : vector<2x32xf32>
    %40 = arith.divf %38, %39 : vector<2x32xf32>
    %41 = vector.extract_strided_slice %27 {offsets = [0, 64], sizes = [2, 32], strides = [1, 1]} : vector<2x128xf32> to vector<2x32xf32>
    %42 = math.tanh %41 : vector<2x32xf32>
    %43 = vector.extract_strided_slice %27 {offsets = [0, 96], sizes = [2, 32], strides = [1, 1]} : vector<2x128xf32> to vector<2x32xf32>
    %44 = arith.negf %43 : vector<2x32xf32>
    %45 = math.exp %44 : vector<2x32xf32>
    %cst_29 = arith.constant 1.000000e+00 : f32
    %46 = vector.broadcast %cst_29 : f32 to vector<2x32xf32>
    %47 = arith.addf %46, %45 : vector<2x32xf32>
    %48 = arith.divf %46, %47 : vector<2x32xf32>
    %49 = arith.mulf %40, %28 : vector<2x32xf32>
    %50 = arith.mulf %34, %42 : vector<2x32xf32>
    %51 = arith.addf %49, %50 : vector<2x32xf32>
    %52 = math.tanh %51 : vector<2x32xf32>
    %53 = arith.mulf %48, %52 : vector<2x32xf32>
    %c0_30 = arith.constant 0 : index
    %c0_31 = arith.constant 0 : index
    %54 = vector.load %arg8[%c0_30, %c0_31] : memref<2x32xf32, #tpu.memory_space<vmem>>, vector<2x32xf32>
    tpu.vector_store %arg8[%c0_30, %c0_31], %53 {strides = array<i32>} : memref<2x32xf32, #tpu.memory_space<vmem>>, vector<2x32xf32>,
    %c0_32 = arith.constant 0 : index
    %c0_33 = arith.constant 0 : index
    %55 = vector.load %arg9[%c0_32, %c0_33] : memref<2x32xf32, #tpu.memory_space<vmem>>, vector<2x32xf32>
    tpu.vector_store %arg9[%c0_32, %c0_33], %51 {strides = array<i32>} : memref<2x32xf32, #tpu.memory_space<vmem>>, vector<2x32xf32>,
    %c0_34 = arith.constant 0 : index
    %c0_35 = arith.constant 0 : index
    %c0_36 = arith.constant 0 : index
    %56 = vector.load %arg6[%c0_34, %c0_35, %c0_36] : memref<8x2x32xf32, #tpu.memory_space<vmem>>, vector<1x2x32xf32>
    %57 = vector.shape_cast %56 : vector<1x2x32xf32> to vector<2x32xf32>
    %58 = vector.shape_cast %53 : vector<2x32xf32> to vector<1x2x32xf32>
    tpu.vector_store %arg6[%c0_34, %c0_35, %c0_36], %58 {strides = array<i32>} : memref<8x2x32xf32, #tpu.memory_space<vmem>>, vector<1x2x32xf32>,
    %59 = vector.extract_strided_slice %18 {offsets = [14, 0], sizes = [2, 128], strides = [1, 1]} : vector<16x128xf32> to vector<2x128xf32>
    %c0_37 = arith.constant 0 : index
    %c0_38 = arith.constant 0 : index
    %60 = vector.load %arg10[%c0_37, %c0_38] : memref<2x32xf32, #tpu.memory_space<vmem>>, vector<2x32xf32>
    %61 = arith.truncf %60 : vector<2x32xf32> to vector<2x32xbf16>
    %cst_39 = arith.constant dense<0.000000e+00> : vector<2x128xf32>
    %62 = tpu.matmul %61, %22, %cst_39 {dimension_numbers = #tpu.dot_dimension_numbers<[1], [0], [0], [1], [0, 0, 1, 1], [], []>} : vector<2x32xbf16>, vector<32x128xbf16>, vector<2x128xf32> -> vector<2x128xf32>
    %63 = arith.addf %59, %62 : vector<2x128xf32>
    %c0_40 = arith.constant 0 : index
    %c0_41 = arith.constant 0 : index
    %64 = vector.load %arg11[%c0_40, %c0_41] : memref<2x32xf32, #tpu.memory_space<vmem>>, vector<2x32xf32>
    %65 = vector.extract_strided_slice %63 {offsets = [0, 0], sizes = [2, 32], strides = [1, 1]} : vector<2x128xf32> to vector<2x32xf32>
    %66 = arith.negf %65 : vector<2x32xf32>
    %67 = math.exp %66 : vector<2x32xf32>
    %cst_42 = arith.constant 1.000000e+00 : f32
    %68 = vector.broadcast %cst_42 : f32 to vector<2x32xf32>
    %69 = arith.addf %68, %67 : vector<2x32xf32>
    %70 = arith.divf %68, %69 : vector<2x32xf32>
    %71 = vector.extract_strided_slice %63 {offsets = [0, 32], sizes = [2, 32], strides = [1, 1]} : vector<2x128xf32> to vector<2x32xf32>
    %72 = arith.negf %71 : vector<2x32xf32>
    %73 = math.exp %72 : vector<2x32xf32>
    %cst_43 = arith.constant 1.000000e+00 : f32
    %74 = vector.broadcast %cst_43 : f32 to vector<2x32xf32>
    %75 = arith.addf %74, %73 : vector<2x32xf32>
    %76 = arith.divf %74, %75 : vector<2x32xf32>
    %77 = vector.extract_strided_slice %63 {offsets = [0, 64], sizes = [2, 32], strides = [1, 1]} : vector<2x128xf32> to vector<2x32xf32>
    %78 = math.tanh %77 : vector<2x32xf32>
    %79 = vector.extract_strided_slice %63 {offsets = [0, 96], sizes = [2, 32], strides = [1, 1]} : vector<2x128xf32> to vector<2x32xf32>
    %80 = arith.negf %79 : vector<2x32xf32>
    %81 = math.exp %80 : vector<2x32xf32>
    %cst_44 = arith.constant 1.000000e+00 : f32
    %82 = vector.broadcast %cst_44 : f32 to vector<2x32xf32>
    %83 = arith.addf %82, %81 : vector<2x32xf32>
    %84 = arith.divf %82, %83 : vector<2x32xf32>
    %85 = arith.mulf %76, %64 : vector<2x32xf32>
    %86 = arith.mulf %70, %78 : vector<2x32xf32>
    %87 = arith.addf %85, %86 : vector<2x32xf32>
    %88 = math.tanh %87 : vector<2x32xf32>
    %89 = arith.mulf %84, %88 : vector<2x32xf32>
    %c0_45 = arith.constant 0 : index
    %c0_46 = arith.constant 0 : index
    %90 = vector.load %arg10[%c0_45, %c0_46] : memref<2x32xf32, #tpu.memory_space<vmem>>, vector<2x32xf32>
    tpu.vector_store %arg10[%c0_45, %c0_46], %89 {strides = array<i32>} : memref<2x32xf32, #tpu.memory_space<vmem>>, vector<2x32xf32>,
    %c0_47 = arith.constant 0 : index
    %c0_48 = arith.constant 0 : index
    %91 = vector.load %arg11[%c0_47, %c0_48] : memref<2x32xf32, #tpu.memory_space<vmem>>, vector<2x32xf32>
    tpu.vector_store %arg11[%c0_47, %c0_48], %87 {strides = array<i32>} : memref<2x32xf32, #tpu.memory_space<vmem>>, vector<2x32xf32>,
    %c7 = arith.constant 7 : index
    %c0_49 = arith.constant 0 : index
    %c0_50 = arith.constant 0 : index
    %92 = vector.load %arg7[%c7, %c0_49, %c0_50] : memref<8x2x32xf32, #tpu.memory_space<vmem>>, vector<1x2x32xf32>
    %93 = vector.shape_cast %92 : vector<1x2x32xf32> to vector<2x32xf32>
    %94 = vector.shape_cast %89 : vector<2x32xf32> to vector<1x2x32xf32>
    tpu.vector_store %arg7[%c7, %c0_49, %c0_50], %94 {strides = array<i32>} : memref<8x2x32xf32, #tpu.memory_space<vmem>>, vector<1x2x32xf32>,
    %95 = vector.extract_strided_slice %10 {offsets = [2, 0], sizes = [2, 128], strides = [1, 1]} : vector<16x128xf32> to vector<2x128xf32>
    %c0_51 = arith.constant 0 : index
    %c0_52 = arith.constant 0 : index
    %96 = vector.load %arg8[%c0_51, %c0_52] : memref<2x32xf32, #tpu.memory_space<vmem>>, vector<2x32xf32>
    %97 = arith.truncf %96 : vector<2x32xf32> to vector<2x32xbf16>
    %cst_53 = arith.constant dense<0.000000e+00> : vector<2x128xf32>
    %98 = tpu.matmul %97, %20, %cst_53 {dimension_numbers = #tpu.dot_dimension_numbers<[1], [0], [0], [1], [0, 0, 1, 1], [], []>} : vector<2x32xbf16>, vector<32x128xbf16>, vector<2x128xf32> -> vector<2x128xf32>
    %99 = arith.addf %95, %98 : vector<2x128xf32>
    %c0_54 = arith.constant 0 : index
    %c0_55 = arith.constant 0 : index
    %100 = vector.load %arg9[%c0_54, %c0_55] : memref<2x32xf32, #tpu.memory_space<vmem>>, vector<2x32xf32>
    %101 = vector.extract_strided_slice %99 {offsets = [0, 0], sizes = [2, 32], strides = [1, 1]} : vector<2x128xf32> to vector<2x32xf32>
    %102 = arith.negf %101 : vector<2x32xf32>
    %103 = math.exp %102 : vector<2x32xf32>
    %cst_56 = arith.constant 1.000000e+00 : f32
    %104 = vector.broadcast %cst_56 : f32 to vector<2x32xf32>
    %105 = arith.addf %104, %103 : vector<2x32xf32>
    %106 = arith.divf %104, %105 : vector<2x32xf32>
    %107 = vector.extract_strided_slice %99 {offsets = [0, 32], sizes = [2, 32], strides = [1, 1]} : vector<2x128xf32> to vector<2x32xf32>
    %108 = arith.negf %107 : vector<2x32xf32>
    %109 = math.exp %108 : vector<2x32xf32>
    %cst_57 = arith.constant 1.000000e+00 : f32
    %110 = vector.broadcast %cst_57 : f32 to vector<2x32xf32>
    %111 = arith.addf %110, %109 : vector<2x32xf32>
    %112 = arith.divf %110, %111 : vector<2x32xf32>
    %113 = vector.extract_strided_slice %99 {offsets = [0, 64], sizes = [2, 32], strides = [1, 1]} : vector<2x128xf32> to vector<2x32xf32>
    %114 = math.tanh %113 : vector<2x32xf32>
    %115 = vector.extract_strided_slice %99 {offsets = [0, 96], sizes = [2, 32], strides = [1, 1]} : vector<2x128xf32> to vector<2x32xf32>
    %116 = arith.negf %115 : vector<2x32xf32>
    %117 = math.exp %116 : vector<2x32xf32>
    %cst_58 = arith.constant 1.000000e+00 : f32
    %118 = vector.broadcast %cst_58 : f32 to vector<2x32xf32>
    %119 = arith.addf %118, %117 : vector<2x32xf32>
    %120 = arith.divf %118, %119 : vector<2x32xf32>
    %121 = arith.mulf %112, %100 : vector<2x32xf32>
    %122 = arith.mulf %106, %114 : vector<2x32xf32>
    %123 = arith.addf %121, %122 : vector<2x32xf32>
    %124 = math.tanh %123 : vector<2x32xf32>
    %125 = arith.mulf %120, %124 : vector<2x32xf32>
    %c0_59 = arith.constant 0 : index
    %c0_60 = arith.constant 0 : index
    %126 = vector.load %arg8[%c0_59, %c0_60] : memref<2x32xf32, #tpu.memory_space<vmem>>, vector<2x32xf32>
    tpu.vector_store %arg8[%c0_59, %c0_60], %125 {strides = array<i32>} : memref<2x32xf32, #tpu.memory_space<vmem>>, vector<2x32xf32>,
    %c0_61 = arith.constant 0 : index
    %c0_62 = arith.constant 0 : index
    %127 = vector.load %arg9[%c0_61, %c0_62] : memref<2x32xf32, #tpu.memory_space<vmem>>, vector<2x32xf32>
    tpu.vector_store %arg9[%c0_61, %c0_62], %123 {strides = array<i32>} : memref<2x32xf32, #tpu.memory_space<vmem>>, vector<2x32xf32>,
    %c1_63 = arith.constant 1 : index
    %c0_64 = arith.constant 0 : index
    %c0_65 = arith.constant 0 : index
    %128 = vector.load %arg6[%c1_63, %c0_64, %c0_65] : memref<8x2x32xf32, #tpu.memory_space<vmem>>, vector<1x2x32xf32>
    %129 = vector.shape_cast %128 : vector<1x2x32xf32> to vector<2x32xf32>
    %130 = vector.shape_cast %125 : vector<2x32xf32> to vector<1x2x32xf32>
    tpu.vector_store %arg6[%c1_63, %c0_64, %c0_65], %130 {strides = array<i32>} : memref<8x2x32xf32, #tpu.memory_space<vmem>>, vector<1x2x32xf32>,
    %131 = vector.extract_strided_slice %18 {offsets = [12, 0], sizes = [2, 128], strides = [1, 1]} : vector<16x128xf32> to vector<2x128xf32>
    %c0_66 = arith.constant 0 : index
    %c0_67 = arith.constant 0 : index
    %132 = vector.load %arg10[%c0_66, %c0_67] : memref<2x32xf32, #tpu.memory_space<vmem>>, vector<2x32xf32>
    %133 = arith.truncf %132 : vector<2x32xf32> to vector<2x32xbf16>
    %cst_68 = arith.constant dense<0.000000e+00> : vector<2x128xf32>
    %134 = tpu.matmul %133, %22, %cst_68 {dimension_numbers = #tpu.dot_dimension_numbers<[1], [0], [0], [1], [0, 0, 1, 1], [], []>} : vector<2x32xbf16>, vector<32x128xbf16>, vector<2x128xf32> -> vector<2x128xf32>
    %135 = arith.addf %131, %134 : vector<2x128xf32>
    %c0_69 = arith.constant 0 : index
    %c0_70 = arith.constant 0 : index
    %136 = vector.load %arg11[%c0_69, %c0_70] : memref<2x32xf32, #tpu.memory_space<vmem>>, vector<2x32xf32>
    %137 = vector.extract_strided_slice %135 {offsets = [0, 0], sizes = [2, 32], strides = [1, 1]} : vector<2x128xf32> to vector<2x32xf32>
    %138 = arith.negf %137 : vector<2x32xf32>
    %139 = math.exp %138 : vector<2x32xf32>
    %cst_71 = arith.constant 1.000000e+00 : f32
    %140 = vector.broadcast %cst_71 : f32 to vector<2x32xf32>
    %141 = arith.addf %140, %139 : vector<2x32xf32>
    %142 = arith.divf %140, %141 : vector<2x32xf32>
    %143 = vector.extract_strided_slice %135 {offsets = [0, 32], sizes = [2, 32], strides = [1, 1]} : vector<2x128xf32> to vector<2x32xf32>
    %144 = arith.negf %143 : vector<2x32xf32>
    %145 = math.exp %144 : vector<2x32xf32>
    %cst_72 = arith.constant 1.000000e+00 : f32
    %146 = vector.broadcast %cst_72 : f32 to vector<2x32xf32>
    %147 = arith.addf %146, %145 : vector<2x32xf32>
    %148 = arith.divf %146, %147 : vector<2x32xf32>
    %149 = vector.extract_strided_slice %135 {offsets = [0, 64], sizes = [2, 32], strides = [1, 1]} : vector<2x128xf32> to vector<2x32xf32>
    %150 = math.tanh %149 : vector<2x32xf32>
    %151 = vector.extract_strided_slice %135 {offsets = [0, 96], sizes = [2, 32], strides = [1, 1]} : vector<2x128xf32> to vector<2x32xf32>
    %152 = arith.negf %151 : vector<2x32xf32>
    %153 = math.exp %152 : vector<2x32xf32>
    %cst_73 = arith.constant 1.000000e+00 : f32
    %154 = vector.broadcast %cst_73 : f32 to vector<2x32xf32>
    %155 = arith.addf %154, %153 : vector<2x32xf32>
    %156 = arith.divf %154, %155 : vector<2x32xf32>
    %157 = arith.mulf %148, %136 : vector<2x32xf32>
    %158 = arith.mulf %142, %150 : vector<2x32xf32>
    %159 = arith.addf %157, %158 : vector<2x32xf32>
    %160 = math.tanh %159 : vector<2x32xf32>
    %161 = arith.mulf %156, %160 : vector<2x32xf32>
    %c0_74 = arith.constant 0 : index
    %c0_75 = arith.constant 0 : index
    %162 = vector.load %arg10[%c0_74, %c0_75] : memref<2x32xf32, #tpu.memory_space<vmem>>, vector<2x32xf32>
    tpu.vector_store %arg10[%c0_74, %c0_75], %161 {strides = array<i32>} : memref<2x32xf32, #tpu.memory_space<vmem>>, vector<2x32xf32>,
    %c0_76 = arith.constant 0 : index
    %c0_77 = arith.constant 0 : index
    %163 = vector.load %arg11[%c0_76, %c0_77] : memref<2x32xf32, #tpu.memory_space<vmem>>, vector<2x32xf32>
    tpu.vector_store %arg11[%c0_76, %c0_77], %159 {strides = array<i32>} : memref<2x32xf32, #tpu.memory_space<vmem>>, vector<2x32xf32>,
    %c6 = arith.constant 6 : index
    %c0_78 = arith.constant 0 : index
    %c0_79 = arith.constant 0 : index
    %164 = vector.load %arg7[%c6, %c0_78, %c0_79] : memref<8x2x32xf32, #tpu.memory_space<vmem>>, vector<1x2x32xf32>
    %165 = vector.shape_cast %164 : vector<1x2x32xf32> to vector<2x32xf32>
    %166 = vector.shape_cast %161 : vector<2x32xf32> to vector<1x2x32xf32>
    tpu.vector_store %arg7[%c6, %c0_78, %c0_79], %166 {strides = array<i32>} : memref<8x2x32xf32, #tpu.memory_space<vmem>>, vector<1x2x32xf32>,
    %167 = vector.extract_strided_slice %10 {offsets = [4, 0], sizes = [2, 128], strides = [1, 1]} : vector<16x128xf32> to vector<2x128xf32>
    %c0_80 = arith.constant 0 : index
    %c0_81 = arith.constant 0 : index
    %168 = vector.load %arg8[%c0_80, %c0_81] : memref<2x32xf32, #tpu.memory_space<vmem>>, vector<2x32xf32>
    %169 = arith.truncf %168 : vector<2x32xf32> to vector<2x32xbf16>
    %cst_82 = arith.constant dense<0.000000e+00> : vector<2x128xf32>
    %170 = tpu.matmul %169, %20, %cst_82 {dimension_numbers = #tpu.dot_dimension_numbers<[1], [0], [0], [1], [0, 0, 1, 1], [], []>} : vector<2x32xbf16>, vector<32x128xbf16>, vector<2x128xf32> -> vector<2x128xf32>
    %171 = arith.addf %167, %170 : vector<2x128xf32>
    %c0_83 = arith.constant 0 : index
    %c0_84 = arith.constant 0 : index
    %172 = vector.load %arg9[%c0_83, %c0_84] : memref<2x32xf32, #tpu.memory_space<vmem>>, vector<2x32xf32>
    %173 = vector.extract_strided_slice %171 {offsets = [0, 0], sizes = [2, 32], strides = [1, 1]} : vector<2x128xf32> to vector<2x32xf32>
    %174 = arith.negf %173 : vector<2x32xf32>
    %175 = math.exp %174 : vector<2x32xf32>
    %cst_85 = arith.constant 1.000000e+00 : f32
    %176 = vector.broadcast %cst_85 : f32 to vector<2x32xf32>
    %177 = arith.addf %176, %175 : vector<2x32xf32>
    %178 = arith.divf %176, %177 : vector<2x32xf32>
    %179 = vector.extract_strided_slice %171 {offsets = [0, 32], sizes = [2, 32], strides = [1, 1]} : vector<2x128xf32> to vector<2x32xf32>
    %180 = arith.negf %179 : vector<2x32xf32>
    %181 = math.exp %180 : vector<2x32xf32>
    %cst_86 = arith.constant 1.000000e+00 : f32
    %182 = vector.broadcast %cst_86 : f32 to vector<2x32xf32>
    %183 = arith.addf %182, %181 : vector<2x32xf32>
    %184 = arith.divf %182, %183 : vector<2x32xf32>
    %185 = vector.extract_strided_slice %171 {offsets = [0, 64], sizes = [2, 32], strides = [1, 1]} : vector<2x128xf32> to vector<2x32xf32>
    %186 = math.tanh %185 : vector<2x32xf32>
    %187 = vector.extract_strided_slice %171 {offsets = [0, 96], sizes = [2, 32], strides = [1, 1]} : vector<2x128xf32> to vector<2x32xf32>
    %188 = arith.negf %187 : vector<2x32xf32>
    %189 = math.exp %188 : vector<2x32xf32>
    %cst_87 = arith.constant 1.000000e+00 : f32
    %190 = vector.broadcast %cst_87 : f32 to vector<2x32xf32>
    %191 = arith.addf %190, %189 : vector<2x32xf32>
    %192 = arith.divf %190, %191 : vector<2x32xf32>
    %193 = arith.mulf %184, %172 : vector<2x32xf32>
    %194 = arith.mulf %178, %186 : vector<2x32xf32>
    %195 = arith.addf %193, %194 : vector<2x32xf32>
    %196 = math.tanh %195 : vector<2x32xf32>
    %197 = arith.mulf %192, %196 : vector<2x32xf32>
    %c0_88 = arith.constant 0 : index
    %c0_89 = arith.constant 0 : index
    %198 = vector.load %arg8[%c0_88, %c0_89] : memref<2x32xf32, #tpu.memory_space<vmem>>, vector<2x32xf32>
    tpu.vector_store %arg8[%c0_88, %c0_89], %197 {strides = array<i32>} : memref<2x32xf32, #tpu.memory_space<vmem>>, vector<2x32xf32>,
    %c0_90 = arith.constant 0 : index
    %c0_91 = arith.constant 0 : index
    %199 = vector.load %arg9[%c0_90, %c0_91] : memref<2x32xf32, #tpu.memory_space<vmem>>, vector<2x32xf32>
    tpu.vector_store %arg9[%c0_90, %c0_91], %195 {strides = array<i32>} : memref<2x32xf32, #tpu.memory_space<vmem>>, vector<2x32xf32>,
    %c2 = arith.constant 2 : index
    %c0_92 = arith.constant 0 : index
    %c0_93 = arith.constant 0 : index
    %200 = vector.load %arg6[%c2, %c0_92, %c0_93] : memref<8x2x32xf32, #tpu.memory_space<vmem>>, vector<1x2x32xf32>
    %201 = vector.shape_cast %200 : vector<1x2x32xf32> to vector<2x32xf32>
    %202 = vector.shape_cast %197 : vector<2x32xf32> to vector<1x2x32xf32>
    tpu.vector_store %arg6[%c2, %c0_92, %c0_93], %202 {strides = array<i32>} : memref<8x2x32xf32, #tpu.memory_space<vmem>>, vector<1x2x32xf32>,
    %203 = vector.extract_strided_slice %18 {offsets = [10, 0], sizes = [2, 128], strides = [1, 1]} : vector<16x128xf32> to vector<2x128xf32>
    %c0_94 = arith.constant 0 : index
    %c0_95 = arith.constant 0 : index
    %204 = vector.load %arg10[%c0_94, %c0_95] : memref<2x32xf32, #tpu.memory_space<vmem>>, vector<2x32xf32>
    %205 = arith.truncf %204 : vector<2x32xf32> to vector<2x32xbf16>
    %cst_96 = arith.constant dense<0.000000e+00> : vector<2x128xf32>
    %206 = tpu.matmul %205, %22, %cst_96 {dimension_numbers = #tpu.dot_dimension_numbers<[1], [0], [0], [1], [0, 0, 1, 1], [], []>} : vector<2x32xbf16>, vector<32x128xbf16>, vector<2x128xf32> -> vector<2x128xf32>
    %207 = arith.addf %203, %206 : vector<2x128xf32>
    %c0_97 = arith.constant 0 : index
    %c0_98 = arith.constant 0 : index
    %208 = vector.load %arg11[%c0_97, %c0_98] : memref<2x32xf32, #tpu.memory_space<vmem>>, vector<2x32xf32>
    %209 = vector.extract_strided_slice %207 {offsets = [0, 0], sizes = [2, 32], strides = [1, 1]} : vector<2x128xf32> to vector<2x32xf32>
    %210 = arith.negf %209 : vector<2x32xf32>
    %211 = math.exp %210 : vector<2x32xf32>
    %cst_99 = arith.constant 1.000000e+00 : f32
    %212 = vector.broadcast %cst_99 : f32 to vector<2x32xf32>
    %213 = arith.addf %212, %211 : vector<2x32xf32>
    %214 = arith.divf %212, %213 : vector<2x32xf32>
    %215 = vector.extract_strided_slice %207 {offsets = [0, 32], sizes = [2, 32], strides = [1, 1]} : vector<2x128xf32> to vector<2x32xf32>
    %216 = arith.negf %215 : vector<2x32xf32>
    %217 = math.exp %216 : vector<2x32xf32>
    %cst_100 = arith.constant 1.000000e+00 : f32
    %218 = vector.broadcast %cst_100 : f32 to vector<2x32xf32>
    %219 = arith.addf %218, %217 : vector<2x32xf32>
    %220 = arith.divf %218, %219 : vector<2x32xf32>
    %221 = vector.extract_strided_slice %207 {offsets = [0, 64], sizes = [2, 32], strides = [1, 1]} : vector<2x128xf32> to vector<2x32xf32>
    %222 = math.tanh %221 : vector<2x32xf32>
    %223 = vector.extract_strided_slice %207 {offsets = [0, 96], sizes = [2, 32], strides = [1, 1]} : vector<2x128xf32> to vector<2x32xf32>
    %224 = arith.negf %223 : vector<2x32xf32>
    %225 = math.exp %224 : vector<2x32xf32>
    %cst_101 = arith.constant 1.000000e+00 : f32
    %226 = vector.broadcast %cst_101 : f32 to vector<2x32xf32>
    %227 = arith.addf %226, %225 : vector<2x32xf32>
    %228 = arith.divf %226, %227 : vector<2x32xf32>
    %229 = arith.mulf %220, %208 : vector<2x32xf32>
    %230 = arith.mulf %214, %222 : vector<2x32xf32>
    %231 = arith.addf %229, %230 : vector<2x32xf32>
    %232 = math.tanh %231 : vector<2x32xf32>
    %233 = arith.mulf %228, %232 : vector<2x32xf32>
    %c0_102 = arith.constant 0 : index
    %c0_103 = arith.constant 0 : index
    %234 = vector.load %arg10[%c0_102, %c0_103] : memref<2x32xf32, #tpu.memory_space<vmem>>, vector<2x32xf32>
    tpu.vector_store %arg10[%c0_102, %c0_103], %233 {strides = array<i32>} : memref<2x32xf32, #tpu.memory_space<vmem>>, vector<2x32xf32>,
    %c0_104 = arith.constant 0 : index
    %c0_105 = arith.constant 0 : index
    %235 = vector.load %arg11[%c0_104, %c0_105] : memref<2x32xf32, #tpu.memory_space<vmem>>, vector<2x32xf32>
    tpu.vector_store %arg11[%c0_104, %c0_105], %231 {strides = array<i32>} : memref<2x32xf32, #tpu.memory_space<vmem>>, vector<2x32xf32>,
    %c5 = arith.constant 5 : index
    %c0_106 = arith.constant 0 : index
    %c0_107 = arith.constant 0 : index
    %236 = vector.load %arg7[%c5, %c0_106, %c0_107] : memref<8x2x32xf32, #tpu.memory_space<vmem>>, vector<1x2x32xf32>
    %237 = vector.shape_cast %236 : vector<1x2x32xf32> to vector<2x32xf32>
    %238 = vector.shape_cast %233 : vector<2x32xf32> to vector<1x2x32xf32>
    tpu.vector_store %arg7[%c5, %c0_106, %c0_107], %238 {strides = array<i32>} : memref<8x2x32xf32, #tpu.memory_space<vmem>>, vector<1x2x32xf32>,
    %239 = vector.extract_strided_slice %10 {offsets = [6, 0], sizes = [2, 128], strides = [1, 1]} : vector<16x128xf32> to vector<2x128xf32>
    %c0_108 = arith.constant 0 : index
    %c0_109 = arith.constant 0 : index
    %240 = vector.load %arg8[%c0_108, %c0_109] : memref<2x32xf32, #tpu.memory_space<vmem>>, vector<2x32xf32>
    %241 = arith.truncf %240 : vector<2x32xf32> to vector<2x32xbf16>
    %cst_110 = arith.constant dense<0.000000e+00> : vector<2x128xf32>
    %242 = tpu.matmul %241, %20, %cst_110 {dimension_numbers = #tpu.dot_dimension_numbers<[1], [0], [0], [1], [0, 0, 1, 1], [], []>} : vector<2x32xbf16>, vector<32x128xbf16>, vector<2x128xf32> -> vector<2x128xf32>
    %243 = arith.addf %239, %242 : vector<2x128xf32>
    %c0_111 = arith.constant 0 : index
    %c0_112 = arith.constant 0 : index
    %244 = vector.load %arg9[%c0_111, %c0_112] : memref<2x32xf32, #tpu.memory_space<vmem>>, vector<2x32xf32>
    %245 = vector.extract_strided_slice %243 {offsets = [0, 0], sizes = [2, 32], strides = [1, 1]} : vector<2x128xf32> to vector<2x32xf32>
    %246 = arith.negf %245 : vector<2x32xf32>
    %247 = math.exp %246 : vector<2x32xf32>
    %cst_113 = arith.constant 1.000000e+00 : f32
    %248 = vector.broadcast %cst_113 : f32 to vector<2x32xf32>
    %249 = arith.addf %248, %247 : vector<2x32xf32>
    %250 = arith.divf %248, %249 : vector<2x32xf32>
    %251 = vector.extract_strided_slice %243 {offsets = [0, 32], sizes = [2, 32], strides = [1, 1]} : vector<2x128xf32> to vector<2x32xf32>
    %252 = arith.negf %251 : vector<2x32xf32>
    %253 = math.exp %252 : vector<2x32xf32>
    %cst_114 = arith.constant 1.000000e+00 : f32
    %254 = vector.broadcast %cst_114 : f32 to vector<2x32xf32>
    %255 = arith.addf %254, %253 : vector<2x32xf32>
    %256 = arith.divf %254, %255 : vector<2x32xf32>
    %257 = vector.extract_strided_slice %243 {offsets = [0, 64], sizes = [2, 32], strides = [1, 1]} : vector<2x128xf32> to vector<2x32xf32>
    %258 = math.tanh %257 : vector<2x32xf32>
    %259 = vector.extract_strided_slice %243 {offsets = [0, 96], sizes = [2, 32], strides = [1, 1]} : vector<2x128xf32> to vector<2x32xf32>
    %260 = arith.negf %259 : vector<2x32xf32>
    %261 = math.exp %260 : vector<2x32xf32>
    %cst_115 = arith.constant 1.000000e+00 : f32
    %262 = vector.broadcast %cst_115 : f32 to vector<2x32xf32>
    %263 = arith.addf %262, %261 : vector<2x32xf32>
    %264 = arith.divf %262, %263 : vector<2x32xf32>
    %265 = arith.mulf %256, %244 : vector<2x32xf32>
    %266 = arith.mulf %250, %258 : vector<2x32xf32>
    %267 = arith.addf %265, %266 : vector<2x32xf32>
    %268 = math.tanh %267 : vector<2x32xf32>
    %269 = arith.mulf %264, %268 : vector<2x32xf32>
    %c0_116 = arith.constant 0 : index
    %c0_117 = arith.constant 0 : index
    %270 = vector.load %arg8[%c0_116, %c0_117] : memref<2x32xf32, #tpu.memory_space<vmem>>, vector<2x32xf32>
    tpu.vector_store %arg8[%c0_116, %c0_117], %269 {strides = array<i32>} : memref<2x32xf32, #tpu.memory_space<vmem>>, vector<2x32xf32>,
    %c0_118 = arith.constant 0 : index
    %c0_119 = arith.constant 0 : index
    %271 = vector.load %arg9[%c0_118, %c0_119] : memref<2x32xf32, #tpu.memory_space<vmem>>, vector<2x32xf32>
    tpu.vector_store %arg9[%c0_118, %c0_119], %267 {strides = array<i32>} : memref<2x32xf32, #tpu.memory_space<vmem>>, vector<2x32xf32>,
    %c3 = arith.constant 3 : index
    %c0_120 = arith.constant 0 : index
    %c0_121 = arith.constant 0 : index
    %272 = vector.load %arg6[%c3, %c0_120, %c0_121] : memref<8x2x32xf32, #tpu.memory_space<vmem>>, vector<1x2x32xf32>
    %273 = vector.shape_cast %272 : vector<1x2x32xf32> to vector<2x32xf32>
    %274 = vector.shape_cast %269 : vector<2x32xf32> to vector<1x2x32xf32>
    tpu.vector_store %arg6[%c3, %c0_120, %c0_121], %274 {strides = array<i32>} : memref<8x2x32xf32, #tpu.memory_space<vmem>>, vector<1x2x32xf32>,
    %275 = vector.extract_strided_slice %18 {offsets = [8, 0], sizes = [2, 128], strides = [1, 1]} : vector<16x128xf32> to vector<2x128xf32>
    %c0_122 = arith.constant 0 : index
    %c0_123 = arith.constant 0 : index
    %276 = vector.load %arg10[%c0_122, %c0_123] : memref<2x32xf32, #tpu.memory_space<vmem>>, vector<2x32xf32>
    %277 = arith.truncf %276 : vector<2x32xf32> to vector<2x32xbf16>
    %cst_124 = arith.constant dense<0.000000e+00> : vector<2x128xf32>
    %278 = tpu.matmul %277, %22, %cst_124 {dimension_numbers = #tpu.dot_dimension_numbers<[1], [0], [0], [1], [0, 0, 1, 1], [], []>} : vector<2x32xbf16>, vector<32x128xbf16>, vector<2x128xf32> -> vector<2x128xf32>
    %279 = arith.addf %275, %278 : vector<2x128xf32>
    %c0_125 = arith.constant 0 : index
    %c0_126 = arith.constant 0 : index
    %280 = vector.load %arg11[%c0_125, %c0_126] : memref<2x32xf32, #tpu.memory_space<vmem>>, vector<2x32xf32>
    %281 = vector.extract_strided_slice %279 {offsets = [0, 0], sizes = [2, 32], strides = [1, 1]} : vector<2x128xf32> to vector<2x32xf32>
    %282 = arith.negf %281 : vector<2x32xf32>
    %283 = math.exp %282 : vector<2x32xf32>
    %cst_127 = arith.constant 1.000000e+00 : f32
    %284 = vector.broadcast %cst_127 : f32 to vector<2x32xf32>
    %285 = arith.addf %284, %283 : vector<2x32xf32>
    %286 = arith.divf %284, %285 : vector<2x32xf32>
    %287 = vector.extract_strided_slice %279 {offsets = [0, 32], sizes = [2, 32], strides = [1, 1]} : vector<2x128xf32> to vector<2x32xf32>
    %288 = arith.negf %287 : vector<2x32xf32>
    %289 = math.exp %288 : vector<2x32xf32>
    %cst_128 = arith.constant 1.000000e+00 : f32
    %290 = vector.broadcast %cst_128 : f32 to vector<2x32xf32>
    %291 = arith.addf %290, %289 : vector<2x32xf32>
    %292 = arith.divf %290, %291 : vector<2x32xf32>
    %293 = vector.extract_strided_slice %279 {offsets = [0, 64], sizes = [2, 32], strides = [1, 1]} : vector<2x128xf32> to vector<2x32xf32>
    %294 = math.tanh %293 : vector<2x32xf32>
    %295 = vector.extract_strided_slice %279 {offsets = [0, 96], sizes = [2, 32], strides = [1, 1]} : vector<2x128xf32> to vector<2x32xf32>
    %296 = arith.negf %295 : vector<2x32xf32>
    %297 = math.exp %296 : vector<2x32xf32>
    %cst_129 = arith.constant 1.000000e+00 : f32
    %298 = vector.broadcast %cst_129 : f32 to vector<2x32xf32>
    %299 = arith.addf %298, %297 : vector<2x32xf32>
    %300 = arith.divf %298, %299 : vector<2x32xf32>
    %301 = arith.mulf %292, %280 : vector<2x32xf32>
    %302 = arith.mulf %286, %294 : vector<2x32xf32>
    %303 = arith.addf %301, %302 : vector<2x32xf32>
    %304 = math.tanh %303 : vector<2x32xf32>
    %305 = arith.mulf %300, %304 : vector<2x32xf32>
    %c0_130 = arith.constant 0 : index
    %c0_131 = arith.constant 0 : index
    %306 = vector.load %arg10[%c0_130, %c0_131] : memref<2x32xf32, #tpu.memory_space<vmem>>, vector<2x32xf32>
    tpu.vector_store %arg10[%c0_130, %c0_131], %305 {strides = array<i32>} : memref<2x32xf32, #tpu.memory_space<vmem>>, vector<2x32xf32>,
    %c0_132 = arith.constant 0 : index
    %c0_133 = arith.constant 0 : index
    %307 = vector.load %arg11[%c0_132, %c0_133] : memref<2x32xf32, #tpu.memory_space<vmem>>, vector<2x32xf32>
    tpu.vector_store %arg11[%c0_132, %c0_133], %303 {strides = array<i32>} : memref<2x32xf32, #tpu.memory_space<vmem>>, vector<2x32xf32>,
    %c4 = arith.constant 4 : index
    %c0_134 = arith.constant 0 : index
    %c0_135 = arith.constant 0 : index
    %308 = vector.load %arg7[%c4, %c0_134, %c0_135] : memref<8x2x32xf32, #tpu.memory_space<vmem>>, vector<1x2x32xf32>
    %309 = vector.shape_cast %308 : vector<1x2x32xf32> to vector<2x32xf32>
    %310 = vector.shape_cast %305 : vector<2x32xf32> to vector<1x2x32xf32>
    tpu.vector_store %arg7[%c4, %c0_134, %c0_135], %310 {strides = array<i32>} : memref<8x2x32xf32, #tpu.memory_space<vmem>>, vector<1x2x32xf32>,
    %311 = vector.extract_strided_slice %10 {offsets = [8, 0], sizes = [2, 128], strides = [1, 1]} : vector<16x128xf32> to vector<2x128xf32>
    %c0_136 = arith.constant 0 : index
    %c0_137 = arith.constant 0 : index
    %312 = vector.load %arg8[%c0_136, %c0_137] : memref<2x32xf32, #tpu.memory_space<vmem>>, vector<2x32xf32>
    %313 = arith.truncf %312 : vector<2x32xf32> to vector<2x32xbf16>
    %cst_138 = arith.constant dense<0.000000e+00> : vector<2x128xf32>
    %314 = tpu.matmul %313, %20, %cst_138 {dimension_numbers = #tpu.dot_dimension_numbers<[1], [0], [0], [1], [0, 0, 1, 1], [], []>} : vector<2x32xbf16>, vector<32x128xbf16>, vector<2x128xf32> -> vector<2x128xf32>
    %315 = arith.addf %311, %314 : vector<2x128xf32>
    %c0_139 = arith.constant 0 : index
    %c0_140 = arith.constant 0 : index
    %316 = vector.load %arg9[%c0_139, %c0_140] : memref<2x32xf32, #tpu.memory_space<vmem>>, vector<2x32xf32>
    %317 = vector.extract_strided_slice %315 {offsets = [0, 0], sizes = [2, 32], strides = [1, 1]} : vector<2x128xf32> to vector<2x32xf32>
    %318 = arith.negf %317 : vector<2x32xf32>
    %319 = math.exp %318 : vector<2x32xf32>
    %cst_141 = arith.constant 1.000000e+00 : f32
    %320 = vector.broadcast %cst_141 : f32 to vector<2x32xf32>
    %321 = arith.addf %320, %319 : vector<2x32xf32>
    %322 = arith.divf %320, %321 : vector<2x32xf32>
    %323 = vector.extract_strided_slice %315 {offsets = [0, 32], sizes = [2, 32], strides = [1, 1]} : vector<2x128xf32> to vector<2x32xf32>
    %324 = arith.negf %323 : vector<2x32xf32>
    %325 = math.exp %324 : vector<2x32xf32>
    %cst_142 = arith.constant 1.000000e+00 : f32
    %326 = vector.broadcast %cst_142 : f32 to vector<2x32xf32>
    %327 = arith.addf %326, %325 : vector<2x32xf32>
    %328 = arith.divf %326, %327 : vector<2x32xf32>
    %329 = vector.extract_strided_slice %315 {offsets = [0, 64], sizes = [2, 32], strides = [1, 1]} : vector<2x128xf32> to vector<2x32xf32>
    %330 = math.tanh %329 : vector<2x32xf32>
    %331 = vector.extract_strided_slice %315 {offsets = [0, 96], sizes = [2, 32], strides = [1, 1]} : vector<2x128xf32> to vector<2x32xf32>
    %332 = arith.negf %331 : vector<2x32xf32>
    %333 = math.exp %332 : vector<2x32xf32>
    %cst_143 = arith.constant 1.000000e+00 : f32
    %334 = vector.broadcast %cst_143 : f32 to vector<2x32xf32>
    %335 = arith.addf %334, %333 : vector<2x32xf32>
    %336 = arith.divf %334, %335 : vector<2x32xf32>
    %337 = arith.mulf %328, %316 : vector<2x32xf32>
    %338 = arith.mulf %322, %330 : vector<2x32xf32>
    %339 = arith.addf %337, %338 : vector<2x32xf32>
    %340 = math.tanh %339 : vector<2x32xf32>
    %341 = arith.mulf %336, %340 : vector<2x32xf32>
    %c0_144 = arith.constant 0 : index
    %c0_145 = arith.constant 0 : index
    %342 = vector.load %arg8[%c0_144, %c0_145] : memref<2x32xf32, #tpu.memory_space<vmem>>, vector<2x32xf32>
    tpu.vector_store %arg8[%c0_144, %c0_145], %341 {strides = array<i32>} : memref<2x32xf32, #tpu.memory_space<vmem>>, vector<2x32xf32>,
    %c0_146 = arith.constant 0 : index
    %c0_147 = arith.constant 0 : index
    %343 = vector.load %arg9[%c0_146, %c0_147] : memref<2x32xf32, #tpu.memory_space<vmem>>, vector<2x32xf32>
    tpu.vector_store %arg9[%c0_146, %c0_147], %339 {strides = array<i32>} : memref<2x32xf32, #tpu.memory_space<vmem>>, vector<2x32xf32>,
    %c4_148 = arith.constant 4 : index
    %c0_149 = arith.constant 0 : index
    %c0_150 = arith.constant 0 : index
    %344 = vector.load %arg6[%c4_148, %c0_149, %c0_150] : memref<8x2x32xf32, #tpu.memory_space<vmem>>, vector<1x2x32xf32>
    %345 = vector.shape_cast %344 : vector<1x2x32xf32> to vector<2x32xf32>
    %346 = vector.shape_cast %341 : vector<2x32xf32> to vector<1x2x32xf32>
    tpu.vector_store %arg6[%c4_148, %c0_149, %c0_150], %346 {strides = array<i32>} : memref<8x2x32xf32, #tpu.memory_space<vmem>>, vector<1x2x32xf32>,
    %347 = vector.extract_strided_slice %18 {offsets = [6, 0], sizes = [2, 128], strides = [1, 1]} : vector<16x128xf32> to vector<2x128xf32>
    %c0_151 = arith.constant 0 : index
    %c0_152 = arith.constant 0 : index
    %348 = vector.load %arg10[%c0_151, %c0_152] : memref<2x32xf32, #tpu.memory_space<vmem>>, vector<2x32xf32>
    %349 = arith.truncf %348 : vector<2x32xf32> to vector<2x32xbf16>
    %cst_153 = arith.constant dense<0.000000e+00> : vector<2x128xf32>
    %350 = tpu.matmul %349, %22, %cst_153 {dimension_numbers = #tpu.dot_dimension_numbers<[1], [0], [0], [1], [0, 0, 1, 1], [], []>} : vector<2x32xbf16>, vector<32x128xbf16>, vector<2x128xf32> -> vector<2x128xf32>
    %351 = arith.addf %347, %350 : vector<2x128xf32>
    %c0_154 = arith.constant 0 : index
    %c0_155 = arith.constant 0 : index
    %352 = vector.load %arg11[%c0_154, %c0_155] : memref<2x32xf32, #tpu.memory_space<vmem>>, vector<2x32xf32>
    %353 = vector.extract_strided_slice %351 {offsets = [0, 0], sizes = [2, 32], strides = [1, 1]} : vector<2x128xf32> to vector<2x32xf32>
    %354 = arith.negf %353 : vector<2x32xf32>
    %355 = math.exp %354 : vector<2x32xf32>
    %cst_156 = arith.constant 1.000000e+00 : f32
    %356 = vector.broadcast %cst_156 : f32 to vector<2x32xf32>
    %357 = arith.addf %356, %355 : vector<2x32xf32>
    %358 = arith.divf %356, %357 : vector<2x32xf32>
    %359 = vector.extract_strided_slice %351 {offsets = [0, 32], sizes = [2, 32], strides = [1, 1]} : vector<2x128xf32> to vector<2x32xf32>
    %360 = arith.negf %359 : vector<2x32xf32>
    %361 = math.exp %360 : vector<2x32xf32>
    %cst_157 = arith.constant 1.000000e+00 : f32
    %362 = vector.broadcast %cst_157 : f32 to vector<2x32xf32>
    %363 = arith.addf %362, %361 : vector<2x32xf32>
    %364 = arith.divf %362, %363 : vector<2x32xf32>
    %365 = vector.extract_strided_slice %351 {offsets = [0, 64], sizes = [2, 32], strides = [1, 1]} : vector<2x128xf32> to vector<2x32xf32>
    %366 = math.tanh %365 : vector<2x32xf32>
    %367 = vector.extract_strided_slice %351 {offsets = [0, 96], sizes = [2, 32], strides = [1, 1]} : vector<2x128xf32> to vector<2x32xf32>
    %368 = arith.negf %367 : vector<2x32xf32>
    %369 = math.exp %368 : vector<2x32xf32>
    %cst_158 = arith.constant 1.000000e+00 : f32
    %370 = vector.broadcast %cst_158 : f32 to vector<2x32xf32>
    %371 = arith.addf %370, %369 : vector<2x32xf32>
    %372 = arith.divf %370, %371 : vector<2x32xf32>
    %373 = arith.mulf %364, %352 : vector<2x32xf32>
    %374 = arith.mulf %358, %366 : vector<2x32xf32>
    %375 = arith.addf %373, %374 : vector<2x32xf32>
    %376 = math.tanh %375 : vector<2x32xf32>
    %377 = arith.mulf %372, %376 : vector<2x32xf32>
    %c0_159 = arith.constant 0 : index
    %c0_160 = arith.constant 0 : index
    %378 = vector.load %arg10[%c0_159, %c0_160] : memref<2x32xf32, #tpu.memory_space<vmem>>, vector<2x32xf32>
    tpu.vector_store %arg10[%c0_159, %c0_160], %377 {strides = array<i32>} : memref<2x32xf32, #tpu.memory_space<vmem>>, vector<2x32xf32>,
    %c0_161 = arith.constant 0 : index
    %c0_162 = arith.constant 0 : index
    %379 = vector.load %arg11[%c0_161, %c0_162] : memref<2x32xf32, #tpu.memory_space<vmem>>, vector<2x32xf32>
    tpu.vector_store %arg11[%c0_161, %c0_162], %375 {strides = array<i32>} : memref<2x32xf32, #tpu.memory_space<vmem>>, vector<2x32xf32>,
    %c3_163 = arith.constant 3 : index
    %c0_164 = arith.constant 0 : index
    %c0_165 = arith.constant 0 : index
    %380 = vector.load %arg7[%c3_163, %c0_164, %c0_165] : memref<8x2x32xf32, #tpu.memory_space<vmem>>, vector<1x2x32xf32>
    %381 = vector.shape_cast %380 : vector<1x2x32xf32> to vector<2x32xf32>
    %382 = vector.shape_cast %377 : vector<2x32xf32> to vector<1x2x32xf32>
    tpu.vector_store %arg7[%c3_163, %c0_164, %c0_165], %382 {strides = array<i32>} : memref<8x2x32xf32, #tpu.memory_space<vmem>>, vector<1x2x32xf32>,
    %383 = vector.extract_strided_slice %10 {offsets = [10, 0], sizes = [2, 128], strides = [1, 1]} : vector<16x128xf32> to vector<2x128xf32>
    %c0_166 = arith.constant 0 : index
    %c0_167 = arith.constant 0 : index
    %384 = vector.load %arg8[%c0_166, %c0_167] : memref<2x32xf32, #tpu.memory_space<vmem>>, vector<2x32xf32>
    %385 = arith.truncf %384 : vector<2x32xf32> to vector<2x32xbf16>
    %cst_168 = arith.constant dense<0.000000e+00> : vector<2x128xf32>
    %386 = tpu.matmul %385, %20, %cst_168 {dimension_numbers = #tpu.dot_dimension_numbers<[1], [0], [0], [1], [0, 0, 1, 1], [], []>} : vector<2x32xbf16>, vector<32x128xbf16>, vector<2x128xf32> -> vector<2x128xf32>
    %387 = arith.addf %383, %386 : vector<2x128xf32>
    %c0_169 = arith.constant 0 : index
    %c0_170 = arith.constant 0 : index
    %388 = vector.load %arg9[%c0_169, %c0_170] : memref<2x32xf32, #tpu.memory_space<vmem>>, vector<2x32xf32>
    %389 = vector.extract_strided_slice %387 {offsets = [0, 0], sizes = [2, 32], strides = [1, 1]} : vector<2x128xf32> to vector<2x32xf32>
    %390 = arith.negf %389 : vector<2x32xf32>
    %391 = math.exp %390 : vector<2x32xf32>
    %cst_171 = arith.constant 1.000000e+00 : f32
    %392 = vector.broadcast %cst_171 : f32 to vector<2x32xf32>
    %393 = arith.addf %392, %391 : vector<2x32xf32>
    %394 = arith.divf %392, %393 : vector<2x32xf32>
    %395 = vector.extract_strided_slice %387 {offsets = [0, 32], sizes = [2, 32], strides = [1, 1]} : vector<2x128xf32> to vector<2x32xf32>
    %396 = arith.negf %395 : vector<2x32xf32>
    %397 = math.exp %396 : vector<2x32xf32>
    %cst_172 = arith.constant 1.000000e+00 : f32
    %398 = vector.broadcast %cst_172 : f32 to vector<2x32xf32>
    %399 = arith.addf %398, %397 : vector<2x32xf32>
    %400 = arith.divf %398, %399 : vector<2x32xf32>
    %401 = vector.extract_strided_slice %387 {offsets = [0, 64], sizes = [2, 32], strides = [1, 1]} : vector<2x128xf32> to vector<2x32xf32>
    %402 = math.tanh %401 : vector<2x32xf32>
    %403 = vector.extract_strided_slice %387 {offsets = [0, 96], sizes = [2, 32], strides = [1, 1]} : vector<2x128xf32> to vector<2x32xf32>
    %404 = arith.negf %403 : vector<2x32xf32>
    %405 = math.exp %404 : vector<2x32xf32>
    %cst_173 = arith.constant 1.000000e+00 : f32
    %406 = vector.broadcast %cst_173 : f32 to vector<2x32xf32>
    %407 = arith.addf %406, %405 : vector<2x32xf32>
    %408 = arith.divf %406, %407 : vector<2x32xf32>
    %409 = arith.mulf %400, %388 : vector<2x32xf32>
    %410 = arith.mulf %394, %402 : vector<2x32xf32>
    %411 = arith.addf %409, %410 : vector<2x32xf32>
    %412 = math.tanh %411 : vector<2x32xf32>
    %413 = arith.mulf %408, %412 : vector<2x32xf32>
    %c0_174 = arith.constant 0 : index
    %c0_175 = arith.constant 0 : index
    %414 = vector.load %arg8[%c0_174, %c0_175] : memref<2x32xf32, #tpu.memory_space<vmem>>, vector<2x32xf32>
    tpu.vector_store %arg8[%c0_174, %c0_175], %413 {strides = array<i32>} : memref<2x32xf32, #tpu.memory_space<vmem>>, vector<2x32xf32>,
    %c0_176 = arith.constant 0 : index
    %c0_177 = arith.constant 0 : index
    %415 = vector.load %arg9[%c0_176, %c0_177] : memref<2x32xf32, #tpu.memory_space<vmem>>, vector<2x32xf32>
    tpu.vector_store %arg9[%c0_176, %c0_177], %411 {strides = array<i32>} : memref<2x32xf32, #tpu.memory_space<vmem>>, vector<2x32xf32>,
    %c5_178 = arith.constant 5 : index
    %c0_179 = arith.constant 0 : index
    %c0_180 = arith.constant 0 : index
    %416 = vector.load %arg6[%c5_178, %c0_179, %c0_180] : memref<8x2x32xf32, #tpu.memory_space<vmem>>, vector<1x2x32xf32>
    %417 = vector.shape_cast %416 : vector<1x2x32xf32> to vector<2x32xf32>
    %418 = vector.shape_cast %413 : vector<2x32xf32> to vector<1x2x32xf32>
    tpu.vector_store %arg6[%c5_178, %c0_179, %c0_180], %418 {strides = array<i32>} : memref<8x2x32xf32, #tpu.memory_space<vmem>>, vector<1x2x32xf32>,
    %419 = vector.extract_strided_slice %18 {offsets = [4, 0], sizes = [2, 128], strides = [1, 1]} : vector<16x128xf32> to vector<2x128xf32>
    %c0_181 = arith.constant 0 : index
    %c0_182 = arith.constant 0 : index
    %420 = vector.load %arg10[%c0_181, %c0_182] : memref<2x32xf32, #tpu.memory_space<vmem>>, vector<2x32xf32>
    %421 = arith.truncf %420 : vector<2x32xf32> to vector<2x32xbf16>
    %cst_183 = arith.constant dense<0.000000e+00> : vector<2x128xf32>
    %422 = tpu.matmul %421, %22, %cst_183 {dimension_numbers = #tpu.dot_dimension_numbers<[1], [0], [0], [1], [0, 0, 1, 1], [], []>} : vector<2x32xbf16>, vector<32x128xbf16>, vector<2x128xf32> -> vector<2x128xf32>
    %423 = arith.addf %419, %422 : vector<2x128xf32>
    %c0_184 = arith.constant 0 : index
    %c0_185 = arith.constant 0 : index
    %424 = vector.load %arg11[%c0_184, %c0_185] : memref<2x32xf32, #tpu.memory_space<vmem>>, vector<2x32xf32>
    %425 = vector.extract_strided_slice %423 {offsets = [0, 0], sizes = [2, 32], strides = [1, 1]} : vector<2x128xf32> to vector<2x32xf32>
    %426 = arith.negf %425 : vector<2x32xf32>
    %427 = math.exp %426 : vector<2x32xf32>
    %cst_186 = arith.constant 1.000000e+00 : f32
    %428 = vector.broadcast %cst_186 : f32 to vector<2x32xf32>
    %429 = arith.addf %428, %427 : vector<2x32xf32>
    %430 = arith.divf %428, %429 : vector<2x32xf32>
    %431 = vector.extract_strided_slice %423 {offsets = [0, 32], sizes = [2, 32], strides = [1, 1]} : vector<2x128xf32> to vector<2x32xf32>
    %432 = arith.negf %431 : vector<2x32xf32>
    %433 = math.exp %432 : vector<2x32xf32>
    %cst_187 = arith.constant 1.000000e+00 : f32
    %434 = vector.broadcast %cst_187 : f32 to vector<2x32xf32>
    %435 = arith.addf %434, %433 : vector<2x32xf32>
    %436 = arith.divf %434, %435 : vector<2x32xf32>
    %437 = vector.extract_strided_slice %423 {offsets = [0, 64], sizes = [2, 32], strides = [1, 1]} : vector<2x128xf32> to vector<2x32xf32>
    %438 = math.tanh %437 : vector<2x32xf32>
    %439 = vector.extract_strided_slice %423 {offsets = [0, 96], sizes = [2, 32], strides = [1, 1]} : vector<2x128xf32> to vector<2x32xf32>
    %440 = arith.negf %439 : vector<2x32xf32>
    %441 = math.exp %440 : vector<2x32xf32>
    %cst_188 = arith.constant 1.000000e+00 : f32
    %442 = vector.broadcast %cst_188 : f32 to vector<2x32xf32>
    %443 = arith.addf %442, %441 : vector<2x32xf32>
    %444 = arith.divf %442, %443 : vector<2x32xf32>
    %445 = arith.mulf %436, %424 : vector<2x32xf32>
    %446 = arith.mulf %430, %438 : vector<2x32xf32>
    %447 = arith.addf %445, %446 : vector<2x32xf32>
    %448 = math.tanh %447 : vector<2x32xf32>
    %449 = arith.mulf %444, %448 : vector<2x32xf32>
    %c0_189 = arith.constant 0 : index
    %c0_190 = arith.constant 0 : index
    %450 = vector.load %arg10[%c0_189, %c0_190] : memref<2x32xf32, #tpu.memory_space<vmem>>, vector<2x32xf32>
    tpu.vector_store %arg10[%c0_189, %c0_190], %449 {strides = array<i32>} : memref<2x32xf32, #tpu.memory_space<vmem>>, vector<2x32xf32>,
    %c0_191 = arith.constant 0 : index
    %c0_192 = arith.constant 0 : index
    %451 = vector.load %arg11[%c0_191, %c0_192] : memref<2x32xf32, #tpu.memory_space<vmem>>, vector<2x32xf32>
    tpu.vector_store %arg11[%c0_191, %c0_192], %447 {strides = array<i32>} : memref<2x32xf32, #tpu.memory_space<vmem>>, vector<2x32xf32>,
    %c2_193 = arith.constant 2 : index
    %c0_194 = arith.constant 0 : index
    %c0_195 = arith.constant 0 : index
    %452 = vector.load %arg7[%c2_193, %c0_194, %c0_195] : memref<8x2x32xf32, #tpu.memory_space<vmem>>, vector<1x2x32xf32>
    %453 = vector.shape_cast %452 : vector<1x2x32xf32> to vector<2x32xf32>
    %454 = vector.shape_cast %449 : vector<2x32xf32> to vector<1x2x32xf32>
    tpu.vector_store %arg7[%c2_193, %c0_194, %c0_195], %454 {strides = array<i32>} : memref<8x2x32xf32, #tpu.memory_space<vmem>>, vector<1x2x32xf32>,
    %455 = vector.extract_strided_slice %10 {offsets = [12, 0], sizes = [2, 128], strides = [1, 1]} : vector<16x128xf32> to vector<2x128xf32>
    %c0_196 = arith.constant 0 : index
    %c0_197 = arith.constant 0 : index
    %456 = vector.load %arg8[%c0_196, %c0_197] : memref<2x32xf32, #tpu.memory_space<vmem>>, vector<2x32xf32>
    %457 = arith.truncf %456 : vector<2x32xf32> to vector<2x32xbf16>
    %cst_198 = arith.constant dense<0.000000e+00> : vector<2x128xf32>
    %458 = tpu.matmul %457, %20, %cst_198 {dimension_numbers = #tpu.dot_dimension_numbers<[1], [0], [0], [1], [0, 0, 1, 1], [], []>} : vector<2x32xbf16>, vector<32x128xbf16>, vector<2x128xf32> -> vector<2x128xf32>
    %459 = arith.addf %455, %458 : vector<2x128xf32>
    %c0_199 = arith.constant 0 : index
    %c0_200 = arith.constant 0 : index
    %460 = vector.load %arg9[%c0_199, %c0_200] : memref<2x32xf32, #tpu.memory_space<vmem>>, vector<2x32xf32>
    %461 = vector.extract_strided_slice %459 {offsets = [0, 0], sizes = [2, 32], strides = [1, 1]} : vector<2x128xf32> to vector<2x32xf32>
    %462 = arith.negf %461 : vector<2x32xf32>
    %463 = math.exp %462 : vector<2x32xf32>
    %cst_201 = arith.constant 1.000000e+00 : f32
    %464 = vector.broadcast %cst_201 : f32 to vector<2x32xf32>
    %465 = arith.addf %464, %463 : vector<2x32xf32>
    %466 = arith.divf %464, %465 : vector<2x32xf32>
    %467 = vector.extract_strided_slice %459 {offsets = [0, 32], sizes = [2, 32], strides = [1, 1]} : vector<2x128xf32> to vector<2x32xf32>
    %468 = arith.negf %467 : vector<2x32xf32>
    %469 = math.exp %468 : vector<2x32xf32>
    %cst_202 = arith.constant 1.000000e+00 : f32
    %470 = vector.broadcast %cst_202 : f32 to vector<2x32xf32>
    %471 = arith.addf %470, %469 : vector<2x32xf32>
    %472 = arith.divf %470, %471 : vector<2x32xf32>
    %473 = vector.extract_strided_slice %459 {offsets = [0, 64], sizes = [2, 32], strides = [1, 1]} : vector<2x128xf32> to vector<2x32xf32>
    %474 = math.tanh %473 : vector<2x32xf32>
    %475 = vector.extract_strided_slice %459 {offsets = [0, 96], sizes = [2, 32], strides = [1, 1]} : vector<2x128xf32> to vector<2x32xf32>
    %476 = arith.negf %475 : vector<2x32xf32>
    %477 = math.exp %476 : vector<2x32xf32>
    %cst_203 = arith.constant 1.000000e+00 : f32
    %478 = vector.broadcast %cst_203 : f32 to vector<2x32xf32>
    %479 = arith.addf %478, %477 : vector<2x32xf32>
    %480 = arith.divf %478, %479 : vector<2x32xf32>
    %481 = arith.mulf %472, %460 : vector<2x32xf32>
    %482 = arith.mulf %466, %474 : vector<2x32xf32>
    %483 = arith.addf %481, %482 : vector<2x32xf32>
    %484 = math.tanh %483 : vector<2x32xf32>
    %485 = arith.mulf %480, %484 : vector<2x32xf32>
    %c0_204 = arith.constant 0 : index
    %c0_205 = arith.constant 0 : index
    %486 = vector.load %arg8[%c0_204, %c0_205] : memref<2x32xf32, #tpu.memory_space<vmem>>, vector<2x32xf32>
    tpu.vector_store %arg8[%c0_204, %c0_205], %485 {strides = array<i32>} : memref<2x32xf32, #tpu.memory_space<vmem>>, vector<2x32xf32>,
    %c0_206 = arith.constant 0 : index
    %c0_207 = arith.constant 0 : index
    %487 = vector.load %arg9[%c0_206, %c0_207] : memref<2x32xf32, #tpu.memory_space<vmem>>, vector<2x32xf32>
    tpu.vector_store %arg9[%c0_206, %c0_207], %483 {strides = array<i32>} : memref<2x32xf32, #tpu.memory_space<vmem>>, vector<2x32xf32>,
    %c6_208 = arith.constant 6 : index
    %c0_209 = arith.constant 0 : index
    %c0_210 = arith.constant 0 : index
    %488 = vector.load %arg6[%c6_208, %c0_209, %c0_210] : memref<8x2x32xf32, #tpu.memory_space<vmem>>, vector<1x2x32xf32>
    %489 = vector.shape_cast %488 : vector<1x2x32xf32> to vector<2x32xf32>
    %490 = vector.shape_cast %485 : vector<2x32xf32> to vector<1x2x32xf32>
    tpu.vector_store %arg6[%c6_208, %c0_209, %c0_210], %490 {strides = array<i32>} : memref<8x2x32xf32, #tpu.memory_space<vmem>>, vector<1x2x32xf32>,
    %491 = vector.extract_strided_slice %18 {offsets = [2, 0], sizes = [2, 128], strides = [1, 1]} : vector<16x128xf32> to vector<2x128xf32>
    %c0_211 = arith.constant 0 : index
    %c0_212 = arith.constant 0 : index
    %492 = vector.load %arg10[%c0_211, %c0_212] : memref<2x32xf32, #tpu.memory_space<vmem>>, vector<2x32xf32>
    %493 = arith.truncf %492 : vector<2x32xf32> to vector<2x32xbf16>
    %cst_213 = arith.constant dense<0.000000e+00> : vector<2x128xf32>
    %494 = tpu.matmul %493, %22, %cst_213 {dimension_numbers = #tpu.dot_dimension_numbers<[1], [0], [0], [1], [0, 0, 1, 1], [], []>} : vector<2x32xbf16>, vector<32x128xbf16>, vector<2x128xf32> -> vector<2x128xf32>
    %495 = arith.addf %491, %494 : vector<2x128xf32>
    %c0_214 = arith.constant 0 : index
    %c0_215 = arith.constant 0 : index
    %496 = vector.load %arg11[%c0_214, %c0_215] : memref<2x32xf32, #tpu.memory_space<vmem>>, vector<2x32xf32>
    %497 = vector.extract_strided_slice %495 {offsets = [0, 0], sizes = [2, 32], strides = [1, 1]} : vector<2x128xf32> to vector<2x32xf32>
    %498 = arith.negf %497 : vector<2x32xf32>
    %499 = math.exp %498 : vector<2x32xf32>
    %cst_216 = arith.constant 1.000000e+00 : f32
    %500 = vector.broadcast %cst_216 : f32 to vector<2x32xf32>
    %501 = arith.addf %500, %499 : vector<2x32xf32>
    %502 = arith.divf %500, %501 : vector<2x32xf32>
    %503 = vector.extract_strided_slice %495 {offsets = [0, 32], sizes = [2, 32], strides = [1, 1]} : vector<2x128xf32> to vector<2x32xf32>
    %504 = arith.negf %503 : vector<2x32xf32>
    %505 = math.exp %504 : vector<2x32xf32>
    %cst_217 = arith.constant 1.000000e+00 : f32
    %506 = vector.broadcast %cst_217 : f32 to vector<2x32xf32>
    %507 = arith.addf %506, %505 : vector<2x32xf32>
    %508 = arith.divf %506, %507 : vector<2x32xf32>
    %509 = vector.extract_strided_slice %495 {offsets = [0, 64], sizes = [2, 32], strides = [1, 1]} : vector<2x128xf32> to vector<2x32xf32>
    %510 = math.tanh %509 : vector<2x32xf32>
    %511 = vector.extract_strided_slice %495 {offsets = [0, 96], sizes = [2, 32], strides = [1, 1]} : vector<2x128xf32> to vector<2x32xf32>
    %512 = arith.negf %511 : vector<2x32xf32>
    %513 = math.exp %512 : vector<2x32xf32>
    %cst_218 = arith.constant 1.000000e+00 : f32
    %514 = vector.broadcast %cst_218 : f32 to vector<2x32xf32>
    %515 = arith.addf %514, %513 : vector<2x32xf32>
    %516 = arith.divf %514, %515 : vector<2x32xf32>
    %517 = arith.mulf %508, %496 : vector<2x32xf32>
    %518 = arith.mulf %502, %510 : vector<2x32xf32>
    %519 = arith.addf %517, %518 : vector<2x32xf32>
    %520 = math.tanh %519 : vector<2x32xf32>
    %521 = arith.mulf %516, %520 : vector<2x32xf32>
    %c0_219 = arith.constant 0 : index
    %c0_220 = arith.constant 0 : index
    %522 = vector.load %arg10[%c0_219, %c0_220] : memref<2x32xf32, #tpu.memory_space<vmem>>, vector<2x32xf32>
    tpu.vector_store %arg10[%c0_219, %c0_220], %521 {strides = array<i32>} : memref<2x32xf32, #tpu.memory_space<vmem>>, vector<2x32xf32>,
    %c0_221 = arith.constant 0 : index
    %c0_222 = arith.constant 0 : index
    %523 = vector.load %arg11[%c0_221, %c0_222] : memref<2x32xf32, #tpu.memory_space<vmem>>, vector<2x32xf32>
    tpu.vector_store %arg11[%c0_221, %c0_222], %519 {strides = array<i32>} : memref<2x32xf32, #tpu.memory_space<vmem>>, vector<2x32xf32>,
    %c1_223 = arith.constant 1 : index
    %c0_224 = arith.constant 0 : index
    %c0_225 = arith.constant 0 : index
    %524 = vector.load %arg7[%c1_223, %c0_224, %c0_225] : memref<8x2x32xf32, #tpu.memory_space<vmem>>, vector<1x2x32xf32>
    %525 = vector.shape_cast %524 : vector<1x2x32xf32> to vector<2x32xf32>
    %526 = vector.shape_cast %521 : vector<2x32xf32> to vector<1x2x32xf32>
    tpu.vector_store %arg7[%c1_223, %c0_224, %c0_225], %526 {strides = array<i32>} : memref<8x2x32xf32, #tpu.memory_space<vmem>>, vector<1x2x32xf32>,
    %527 = vector.extract_strided_slice %10 {offsets = [14, 0], sizes = [2, 128], strides = [1, 1]} : vector<16x128xf32> to vector<2x128xf32>
    %c0_226 = arith.constant 0 : index
    %c0_227 = arith.constant 0 : index
    %528 = vector.load %arg8[%c0_226, %c0_227] : memref<2x32xf32, #tpu.memory_space<vmem>>, vector<2x32xf32>
    %529 = arith.truncf %528 : vector<2x32xf32> to vector<2x32xbf16>
    %cst_228 = arith.constant dense<0.000000e+00> : vector<2x128xf32>
    %530 = tpu.matmul %529, %20, %cst_228 {dimension_numbers = #tpu.dot_dimension_numbers<[1], [0], [0], [1], [0, 0, 1, 1], [], []>} : vector<2x32xbf16>, vector<32x128xbf16>, vector<2x128xf32> -> vector<2x128xf32>
    %531 = arith.addf %527, %530 : vector<2x128xf32>
    %c0_229 = arith.constant 0 : index
    %c0_230 = arith.constant 0 : index
    %532 = vector.load %arg9[%c0_229, %c0_230] : memref<2x32xf32, #tpu.memory_space<vmem>>, vector<2x32xf32>
    %533 = vector.extract_strided_slice %531 {offsets = [0, 0], sizes = [2, 32], strides = [1, 1]} : vector<2x128xf32> to vector<2x32xf32>
    %534 = arith.negf %533 : vector<2x32xf32>
    %535 = math.exp %534 : vector<2x32xf32>
    %cst_231 = arith.constant 1.000000e+00 : f32
    %536 = vector.broadcast %cst_231 : f32 to vector<2x32xf32>
    %537 = arith.addf %536, %535 : vector<2x32xf32>
    %538 = arith.divf %536, %537 : vector<2x32xf32>
    %539 = vector.extract_strided_slice %531 {offsets = [0, 32], sizes = [2, 32], strides = [1, 1]} : vector<2x128xf32> to vector<2x32xf32>
    %540 = arith.negf %539 : vector<2x32xf32>
    %541 = math.exp %540 : vector<2x32xf32>
    %cst_232 = arith.constant 1.000000e+00 : f32
    %542 = vector.broadcast %cst_232 : f32 to vector<2x32xf32>
    %543 = arith.addf %542, %541 : vector<2x32xf32>
    %544 = arith.divf %542, %543 : vector<2x32xf32>
    %545 = vector.extract_strided_slice %531 {offsets = [0, 64], sizes = [2, 32], strides = [1, 1]} : vector<2x128xf32> to vector<2x32xf32>
    %546 = math.tanh %545 : vector<2x32xf32>
    %547 = vector.extract_strided_slice %531 {offsets = [0, 96], sizes = [2, 32], strides = [1, 1]} : vector<2x128xf32> to vector<2x32xf32>
    %548 = arith.negf %547 : vector<2x32xf32>
    %549 = math.exp %548 : vector<2x32xf32>
    %cst_233 = arith.constant 1.000000e+00 : f32
    %550 = vector.broadcast %cst_233 : f32 to vector<2x32xf32>
    %551 = arith.addf %550, %549 : vector<2x32xf32>
    %552 = arith.divf %550, %551 : vector<2x32xf32>
    %553 = arith.mulf %544, %532 : vector<2x32xf32>
    %554 = arith.mulf %538, %546 : vector<2x32xf32>
    %555 = arith.addf %553, %554 : vector<2x32xf32>
    %556 = math.tanh %555 : vector<2x32xf32>
    %557 = arith.mulf %552, %556 : vector<2x32xf32>
    %c0_234 = arith.constant 0 : index
    %c0_235 = arith.constant 0 : index
    %558 = vector.load %arg8[%c0_234, %c0_235] : memref<2x32xf32, #tpu.memory_space<vmem>>, vector<2x32xf32>
    tpu.vector_store %arg8[%c0_234, %c0_235], %557 {strides = array<i32>} : memref<2x32xf32, #tpu.memory_space<vmem>>, vector<2x32xf32>,
    %c0_236 = arith.constant 0 : index
    %c0_237 = arith.constant 0 : index
    %559 = vector.load %arg9[%c0_236, %c0_237] : memref<2x32xf32, #tpu.memory_space<vmem>>, vector<2x32xf32>
    tpu.vector_store %arg9[%c0_236, %c0_237], %555 {strides = array<i32>} : memref<2x32xf32, #tpu.memory_space<vmem>>, vector<2x32xf32>,
    %c7_238 = arith.constant 7 : index
    %c0_239 = arith.constant 0 : index
    %c0_240 = arith.constant 0 : index
    %560 = vector.load %arg6[%c7_238, %c0_239, %c0_240] : memref<8x2x32xf32, #tpu.memory_space<vmem>>, vector<1x2x32xf32>
    %561 = vector.shape_cast %560 : vector<1x2x32xf32> to vector<2x32xf32>
    %562 = vector.shape_cast %557 : vector<2x32xf32> to vector<1x2x32xf32>
    tpu.vector_store %arg6[%c7_238, %c0_239, %c0_240], %562 {strides = array<i32>} : memref<8x2x32xf32, #tpu.memory_space<vmem>>, vector<1x2x32xf32>,
    %563 = vector.extract_strided_slice %18 {offsets = [0, 0], sizes = [2, 128], strides = [1, 1]} : vector<16x128xf32> to vector<2x128xf32>
    %c0_241 = arith.constant 0 : index
    %c0_242 = arith.constant 0 : index
    %564 = vector.load %arg10[%c0_241, %c0_242] : memref<2x32xf32, #tpu.memory_space<vmem>>, vector<2x32xf32>
    %565 = arith.truncf %564 : vector<2x32xf32> to vector<2x32xbf16>
    %cst_243 = arith.constant dense<0.000000e+00> : vector<2x128xf32>
    %566 = tpu.matmul %565, %22, %cst_243 {dimension_numbers = #tpu.dot_dimension_numbers<[1], [0], [0], [1], [0, 0, 1, 1], [], []>} : vector<2x32xbf16>, vector<32x128xbf16>, vector<2x128xf32> -> vector<2x128xf32>
    %567 = arith.addf %563, %566 : vector<2x128xf32>
    %c0_244 = arith.constant 0 : index
    %c0_245 = arith.constant 0 : index
    %568 = vector.load %arg11[%c0_244, %c0_245] : memref<2x32xf32, #tpu.memory_space<vmem>>, vector<2x32xf32>
    %569 = vector.extract_strided_slice %567 {offsets = [0, 0], sizes = [2, 32], strides = [1, 1]} : vector<2x128xf32> to vector<2x32xf32>
    %570 = arith.negf %569 : vector<2x32xf32>
    %571 = math.exp %570 : vector<2x32xf32>
    %cst_246 = arith.constant 1.000000e+00 : f32
    %572 = vector.broadcast %cst_246 : f32 to vector<2x32xf32>
    %573 = arith.addf %572, %571 : vector<2x32xf32>
    %574 = arith.divf %572, %573 : vector<2x32xf32>
    %575 = vector.extract_strided_slice %567 {offsets = [0, 32], sizes = [2, 32], strides = [1, 1]} : vector<2x128xf32> to vector<2x32xf32>
    %576 = arith.negf %575 : vector<2x32xf32>
    %577 = math.exp %576 : vector<2x32xf32>
    %cst_247 = arith.constant 1.000000e+00 : f32
    %578 = vector.broadcast %cst_247 : f32 to vector<2x32xf32>
    %579 = arith.addf %578, %577 : vector<2x32xf32>
    %580 = arith.divf %578, %579 : vector<2x32xf32>
    %581 = vector.extract_strided_slice %567 {offsets = [0, 64], sizes = [2, 32], strides = [1, 1]} : vector<2x128xf32> to vector<2x32xf32>
    %582 = math.tanh %581 : vector<2x32xf32>
    %583 = vector.extract_strided_slice %567 {offsets = [0, 96], sizes = [2, 32], strides = [1, 1]} : vector<2x128xf32> to vector<2x32xf32>
    %584 = arith.negf %583 : vector<2x32xf32>
    %585 = math.exp %584 : vector<2x32xf32>
    %cst_248 = arith.constant 1.000000e+00 : f32
    %586 = vector.broadcast %cst_248 : f32 to vector<2x32xf32>
    %587 = arith.addf %586, %585 : vector<2x32xf32>
    %588 = arith.divf %586, %587 : vector<2x32xf32>
    %589 = arith.mulf %580, %568 : vector<2x32xf32>
    %590 = arith.mulf %574, %582 : vector<2x32xf32>
    %591 = arith.addf %589, %590 : vector<2x32xf32>
    %592 = math.tanh %591 : vector<2x32xf32>
    %593 = arith.mulf %588, %592 : vector<2x32xf32>
    %c0_249 = arith.constant 0 : index
    %c0_250 = arith.constant 0 : index
    %594 = vector.load %arg10[%c0_249, %c0_250] : memref<2x32xf32, #tpu.memory_space<vmem>>, vector<2x32xf32>
    tpu.vector_store %arg10[%c0_249, %c0_250], %593 {strides = array<i32>} : memref<2x32xf32, #tpu.memory_space<vmem>>, vector<2x32xf32>,
    %c0_251 = arith.constant 0 : index
    %c0_252 = arith.constant 0 : index
    %595 = vector.load %arg11[%c0_251, %c0_252] : memref<2x32xf32, #tpu.memory_space<vmem>>, vector<2x32xf32>
    tpu.vector_store %arg11[%c0_251, %c0_252], %591 {strides = array<i32>} : memref<2x32xf32, #tpu.memory_space<vmem>>, vector<2x32xf32>,
    %c0_253 = arith.constant 0 : index
    %c0_254 = arith.constant 0 : index
    %c0_255 = arith.constant 0 : index
    %596 = vector.load %arg7[%c0_253, %c0_254, %c0_255] : memref<8x2x32xf32, #tpu.memory_space<vmem>>, vector<1x2x32xf32>
    %597 = vector.shape_cast %596 : vector<1x2x32xf32> to vector<2x32xf32>
    %598 = vector.shape_cast %593 : vector<2x32xf32> to vector<1x2x32xf32>
    tpu.vector_store %arg7[%c0_253, %c0_254, %c0_255], %598 {strides = array<i32>} : memref<8x2x32xf32, #tpu.memory_space<vmem>>, vector<1x2x32xf32>,
    return
  }
  func.func @transform_0(%arg0: i32) -> (i32, i32) {
    %c0_i32 = arith.constant 0 : i32
    %c0_i32_0 = arith.constant 0 : i32
    return %arg0, %c0_i32 : i32, i32
  }
  func.func @transform_1(%arg0: i32) -> (i32, i32) {
    %c0_i32 = arith.constant 0 : i32
    %0 = arith.subi %c0_i32, %arg0 : i32
    %c0_i32_0 = arith.constant 0 : i32
    %c0_i32_1 = arith.constant 0 : i32
    return %0, %c0_i32_0 : i32, i32
  }
  func.func @transform_2(%arg0: i32) -> (i32, i32, i32) {
    %c0_i32 = arith.constant 0 : i32
    %c0_i32_0 = arith.constant 0 : i32
    %c0_i32_1 = arith.constant 0 : i32
    %c0_i32_2 = arith.constant 0 : i32
    return %c0_i32, %c0_i32_0, %c0_i32_1 : i32, i32, i32
  }
  func.func @transform_3(%arg0: i32) -> (i32, i32, i32) {
    %c0_i32 = arith.constant 0 : i32
    %c0_i32_0 = arith.constant 0 : i32
    %c0_i32_1 = arith.constant 0 : i32
    %c0_i32_2 = arith.constant 0 : i32
    return %c0_i32, %c0_i32_0, %c0_i32_1 : i32, i32, i32
  }
  func.func @transform_4(%arg0: i32) -> (i32, i32, i32) {
    %c0_i32 = arith.constant 0 : i32
    %c0_i32_0 = arith.constant 0 : i32
    %c0_i32_1 = arith.constant 0 : i32
    %c0_i32_2 = arith.constant 0 : i32
    return %c0_i32, %c0_i32_0, %c0_i32_1 : i32, i32, i32
  }
  func.func @transform_5(%arg0: i32) -> (i32, i32, i32) {
    %c0_i32 = arith.constant 0 : i32
    %c0_i32_0 = arith.constant 0 : i32
    %c0_i32_1 = arith.constant 0 : i32
    return %arg0, %c0_i32, %c0_i32_0 : i32, i32, i32
  }
  func.func @transform_6(%arg0: i32) -> (i32, i32, i32) {
    %c0_i32 = arith.constant 0 : i32
    %0 = arith.subi %c0_i32, %arg0 : i32
    %c0_i32_0 = arith.constant 0 : i32
    %c0_i32_1 = arith.constant 0 : i32
    %c0_i32_2 = arith.constant 0 : i32
    return %0, %c0_i32_0, %c0_i32_1 : i32, i32, i32
  }
}

</mosaic_0001>

<llo_original>
// kernel: tpu_custom_call.1
$region0: #{tpu_custom_call.1}
  #allocation0 [shape = 'u32[]', space=smem, size = 0x4, offset = 0x4, fixed_abs, tag = 'smem constant byte address 0x4 - core index']
  #allocation1 [shape = 'u32[72,128]{1,0:T(1,128)}', space=vmem, size = 0x9000, scoped, tag = 'internal scratch']
  #allocation2 [shape = 'f32[2,32]{1,0:T(2,128)}', space=vmem, size = 0x400, scoped, tag = 'scratch operand']
  #allocation3 [shape = 'f32[2,32]{1,0:T(2,128)}', space=vmem, size = 0x400, scoped, tag = 'scratch operand']
  #allocation4 [shape = 'f32[2,32]{1,0:T(2,128)}', space=vmem, size = 0x400, scoped, tag = 'scratch operand']
  #allocation5 [shape = 'f32[2,32]{1,0:T(2,128)}', space=vmem, size = 0x400, scoped, tag = 'scratch operand']
  %s0 = inlined_call_operand.hbm [shape: bf16[16,32], index: 0, kind: input, shape index: {}]
  %s1 = inlined_call_operand.hbm [shape: bf16[16,32], index: 1, kind: input, shape index: {}]
  %s2 = inlined_call_operand.hbm [shape: bf16[2,32,128], index: 2, kind: input, shape index: {}]
  %s3 = inlined_call_operand.hbm [shape: bf16[2,32,128], index: 3, kind: input, shape index: {}]
  %s4 = inlined_call_operand.vmem [shape: f32[2,1,128], index: 4, kind: input, shape index: {}]
  %s5 = inlined_call_operand.hbm [shape: f32[8,2,32], index: 5, kind: output, shape index: {0}]
  %s6 = inlined_call_operand.hbm [shape: f32[8,2,32], index: 6, kind: output, shape index: {1}]
  %7 = xla_tuple %s5, %s6
  %s8 = sld [smem:[#allocation0]]
  $region58: #{tpu_custom_call.1} parent=0
    _
  %s10 = ssub.s32 1, %s8
  %s11 = scalar_select 0, %s10, %s8
  $region1: #{tpu_custom_call.1} parent=0
    #allocation6 [shape = 'u8[4096]{0}', space=vmem, size = 0x1000, scoped, tag = 'input window, operand 0, single buffered']
    #allocation7 [shape = 's32[1]{0}', space=sflag, size = 0x4, scoped, tag = 'scoped memory for tpu_custom_call.1']
    #allocation8 [shape = 's32[1]{0}', space=sflag, size = 0x4, scoped, tag = 'scoped memory for tpu_custom_call.1']
    #allocation9 [shape = 'u8[4096]{0}', space=vmem, size = 0x1000, scoped, tag = 'input window, operand 1, single buffered']
    #allocation10 [shape = 's32[1]{0}', space=sflag, size = 0x4, scoped, tag = 'scoped memory for tpu_custom_call.1']
    #allocation11 [shape = 'u8[16384]{0}', space=vmem, size = 0x4000, scoped, tag = 'input window, operand 2, single buffered']
    #allocation12 [shape = 'u8[16384]{0}', space=vmem, size = 0x4000, scoped, tag = 'input window, operand 3, single buffered']
    #allocation13 [shape = 's32[1]{0}', space=sflag, size = 0x4, scoped, tag = 'scoped memory for tpu_custom_call.1']
    #allocation14 [shape = 'u8[8192]{0}', space=vmem, size = 0x2000, scoped, tag = 'output window, operand 0, single buffered']
    #allocation15 [shape = 'u8[8192]{0}', space=vmem, size = 0x2000, scoped, tag = 'output window, operand 1, single buffered']
    #allocation16 [shape = 's32[1]{0}', space=sflag, size = 0x4, scoped, tag = 'scoped memory for tpu_custom_call.1']
    %12 = vsyncpa [#allocation7], 0
    %13 = vsyncpa [#allocation10], 0
    %14 = vsyncpa [#allocation13], 0
    %15 = vsyncpa [#allocation8], 0
    %16 = vsyncpa [#allocation16], 0
    // Predicated region
    $region2: #{tpu_custom_call.1} parent=1 // pred_check
      _
    $region3: #{tpu_custom_call.1} parent=1 // pred_check_branch
      %18 = sbr.rel (0) target = $region5
    $region4: #{tpu_custom_call.1} parent=1 // pred_region
      %20 = vsyncadd [#allocation7], 0
      %s21 = sshll.u32 %s0, 4
      %s22 = int_to_ptr.hbm [resolvable:$true] %s21
      %s23 = sshll.u32 [#allocation6], 4
      %s24 = int_to_ptr.vmem [resolvable:$true] %s23
      %29 = dma.hbm_to_vmem [thread:$0]  %s22, 128, %s24, [#allocation7], 64, 64, 4
    $region5: #{tpu_custom_call.1} parent=1 // pred_fallthru
      _
    // Predicated region
    $region6: #{tpu_custom_call.1} parent=1 // pred_check
      _
    $region7: #{tpu_custom_call.1} parent=1 // pred_check_branch
      %31 = sbr.rel (0) target = $region9
    $region8: #{tpu_custom_call.1} parent=1 // pred_region
      %s32 = ssub.s32 0, 0
      %s33 = smul.u32 2, %s32
      %35 = vsyncadd [#allocation10], 0
      %s36 = smul.addr %s33, 4
      %s37 = scalar_lea.hbm %s1, %s36
      %s38 = sshll.u32 %s37, 4
      %s39 = int_to_ptr.hbm [resolvable:$true] %s38
      %s40 = sshll.u32 [#allocation9], 4
      %s41 = int_to_ptr.vmem [resolvable:$true] %s40
      %46 = dma.hbm_to_vmem [thread:$0]  %s39, 128, %s41, [#allocation10], 64, 64, 4
    $region9: #{tpu_custom_call.1} parent=1 // pred_fallthru
      _
    // Predicated region
    $region10: #{tpu_custom_call.1} parent=1 // pred_check
      _
    $region11: #{tpu_custom_call.1} parent=1 // pred_check_branch
      %48 = sbr.rel (0) target = $region13
    $region12: #{tpu_custom_call.1} parent=1 // pred_region
      %50 = vsyncadd [#allocation10], 0
      %s51 = sshll.u32 %s2, 4
      %s52 = int_to_ptr.hbm [resolvable:$true] %s51
      %s53 = sshll.u32 [#allocation11], 4
      %s54 = int_to_ptr.vmem [resolvable:$true] %s53
      %59 = dma.hbm_to_vmem [thread:$0]  %s52, 512, %s54, [#allocation10], 64, 64, 4
    $region13: #{tpu_custom_call.1} parent=1 // pred_fallthru
      _
    // Predicated region
    $region14: #{tpu_custom_call.1} parent=1 // pred_check
      _
    $region15: #{tpu_custom_call.1} parent=1 // pred_check_branch
      %61 = sbr.rel (0) target = $region17
    $region16: #{tpu_custom_call.1} parent=1 // pred_region
      %63 = vsyncadd [#allocation13], 0
      %s64 = sshll.u32 %s3, 4
      %s65 = int_to_ptr.hbm [resolvable:$true] %s64
      %s66 = sshll.u32 [#allocation12], 4
      %s67 = int_to_ptr.vmem [resolvable:$true] %s66
      %72 = dma.hbm_to_vmem [thread:$0]  %s65, 512, %s67, [#allocation13], 64, 64, 4
    $region17: #{tpu_custom_call.1} parent=1 // pred_fallthru
      _
    // Predicated region
    $region18: #{tpu_custom_call.1} parent=1 // pred_check
      _
    $region19: #{tpu_custom_call.1} parent=1 // pred_check_branch
      %74 = sbr.rel (0) target = $region21
    $region20: #{tpu_custom_call.1} parent=1 // pred_region
      _
    $region21: #{tpu_custom_call.1} parent=1 // pred_fallthru
      _
    // Predicated region
    $region22: #{tpu_custom_call.1} parent=1 // pred_check
      _
    $region23: #{tpu_custom_call.1} parent=1 // pred_check_branch
      %76 = sbr.rel (0) target = $region25
    $region24: #{tpu_custom_call.1} parent=1 // pred_region
      %78 = dma.done [#allocation7], 128
    $region25: #{tpu_custom_call.1} parent=1 // pred_fallthru
      _
    // Predicated region
    $region26: #{tpu_custom_call.1} parent=1 // pred_check
      _
    $region27: #{tpu_custom_call.1} parent=1 // pred_check_branch
      %80 = sbr.rel (0) target = $region29
    $region28: #{tpu_custom_call.1} parent=1 // pred_region
      %82 = dma.done [#allocation10], 128
    $region29: #{tpu_custom_call.1} parent=1 // pred_fallthru
      _
    // Predicated region
    $region30: #{tpu_custom_call.1} parent=1 // pred_check
      _
    $region31: #{tpu_custom_call.1} parent=1 // pred_check_branch
      %84 = sbr.rel (0) target = $region33
    $region32: #{tpu_custom_call.1} parent=1 // pred_region
      %86 = dma.done [#allocation10], 512
    $region33: #{tpu_custom_call.1} parent=1 // pred_fallthru
      _
    // Predicated region
    $region34: #{tpu_custom_call.1} parent=1 // pred_check
      _
    $region35: #{tpu_custom_call.1} parent=1 // pred_check_branch
      %88 = sbr.rel (0) target = $region37
    $region36: #{tpu_custom_call.1} parent=1 // pred_region
      %90 = dma.done [#allocation13], 512
    $region37: #{tpu_custom_call.1} parent=1 // pred_fallthru
      _
    %s91 = ssub.s32 0, 0
    %s92 = smul.u32 2, %s91
    %s93 = ssub.s32 0, 0
    %s94 = smul.u32 8, %s93
    %p96 = scmp.eq.s32.totalorder 0, 0
    // Predicated region
    $region38: #{tpu_custom_call.1} parent=1 // pred_check
      %p97 = pneg %p96
    $region39: #{tpu_custom_call.1} parent=1 // pred_check_branch
      %99 = sbr.rel (%p97) target = $region41
    $region40: #{tpu_custom_call.1} parent=1 // pred_region
      %vm100 = vcmask 254976
      %101 = vst.msk [vmem:[#allocation2] sm:$0x3] %vm100, 0.0
      %102 = vst.msk [vmem:[#allocation3] sm:$0x3] %vm100, 0.0
      %103 = vst.msk [vmem:[#allocation4] sm:$0x3] %vm100, 0.0
      %104 = vst.msk [vmem:[#allocation5] sm:$0x3] %vm100, 0.0
    $region41: #{tpu_custom_call.1} parent=1 // pred_fallthru
      _
    %v105 = vld [vmem:[#allocation6] sm:$0xf]
    %v106 = vld [vmem:[#allocation6 + $0x4] sm:$0xf]
    %v107 = vld [vmem:[#allocation11] sm:$0xf]
    %v108 = vld [vmem:[#allocation11 + $0x4] sm:$0xf]
    %v109 = vld [vmem:[#allocation11 + $0x8] sm:$0xf]
    %v110 = vld [vmem:[#allocation11 + $0xc] sm:$0xf]
    %v111 = vld [vmem:[%s4] sm:$0x1]
    %v113 = vperm.slane %v111, 0
    %v117 = vunpack.c.l.b16 %v105
    %v118 = vunpack.c.l.b16 %v106
    %v119 = vpack.c.b16 %v118, %v117
    %v124 = vunpack.c.l.b16 %v107
    %v125 = vunpack.c.l.b16 %v108
    %v126 = vunpack.c.l.b16 %v109
    %v127 = vunpack.c.l.b16 %v110
    %v128 = vpack.c.b16 %v125, %v124
    %v129 = vpack.c.b16 %v127, %v126
    %vm132 = vcmask 261120
    %v134 = vsel %vm132, %v119, 0
    %136 = vmatpush.bf16.msra.mxu0 0
    %137 = vmatpush.bf16.msra.mxu0 0
    %138 = vmatpush.bf16.msra.mxu0 0
    %139 = vmatpush.bf16.msra.mxu0 0
    %140 = vmatpush.bf16.msra.mxu0 0
    %141 = vmatpush.bf16.msra.mxu0 0
    %142 = vmatpush.bf16.msra.mxu0 %v129
    %143 = vmatpush.bf16.msra.mxu0 %v128
    %144 = vmatmul.bf16.gmra.mxu0 %v134
    %v145 = vpop.f32.mrf.mxu0
    %v146 = vadd.f32 %v113, %v145
    %v147 = vpop.f32.mrf.mxu0
    %v148 = vadd.f32 %v113, %v147
    %149 = vdwg.mxu0
    %v150 = vld [vmem:[#allocation9] sm:$0xf]
    %v151 = vld [vmem:[#allocation9 + $0x4] sm:$0xf]
    %s152 = scalar_lea.vmem [#allocation11], 16
    %v153 = vld [vmem:[%s152] sm:$0xf]
    %v154 = vld [vmem:[%s152 + $0x4] sm:$0xf]
    %v155 = vld [vmem:[%s152 + $0x8] sm:$0xf]
    %v156 = vld [vmem:[%s152 + $0xc] sm:$0xf]
    %s157 = scalar_lea.vmem %s4, 1
    %v158 = vld [vmem:[%s157] sm:$0x1]
    %v160 = vperm.slane %v158, 0
    %v164 = vunpack.c.l.b16 %v150
    %v165 = vunpack.c.l.b16 %v151
    %v166 = vpack.c.b16 %v165, %v164
    %v171 = vunpack.c.l.b16 %v153
    %v172 = vunpack.c.l.b16 %v154
    %v173 = vunpack.c.l.b16 %v155
    %v174 = vunpack.c.l.b16 %v156
    %v175 = vpack.c.b16 %v172, %v171
    %v176 = vpack.c.b16 %v174, %v173
    %v180 = vsel %vm132, %v166, 0
    %182 = vmatpush.bf16.msra.mxu0 0
    %183 = vmatpush.bf16.msra.mxu0 0
    %184 = vmatpush.bf16.msra.mxu0 0
    %185 = vmatpush.bf16.msra.mxu0 0
    %186 = vmatpush.bf16.msra.mxu0 0
    %187 = vmatpush.bf16.msra.mxu0 0
    %188 = vmatpush.bf16.msra.mxu0 %v176
    %189 = vmatpush.bf16.msra.mxu0 %v175
    %190 = vmatmul.bf16.gmra.mxu0 %v180
    %v191 = vpop.f32.mrf.mxu0
    %v192 = vadd.f32 %v160, %v191
    %v193 = vpop.f32.mrf.mxu0
    %v194 = vadd.f32 %v160, %v193
    %195 = vdwg.mxu0
    %v196 = vld [vmem:[#allocation12] sm:$0xf]
    %v197 = vld [vmem:[#allocation12 + $0x4] sm:$0xf]
    %v198 = vld [vmem:[#allocation12 + $0x8] sm:$0xf]
    %v199 = vld [vmem:[#allocation12 + $0xc] sm:$0xf]
    %s200 = scalar_lea.vmem [#allocation12], 16
    %v201 = vld [vmem:[%s200] sm:$0xf]
    %v202 = vld [vmem:[%s200 + $0x4] sm:$0xf]
    %v203 = vld [vmem:[%s200 + $0x8] sm:$0xf]
    %v204 = vld [vmem:[%s200 + $0xc] sm:$0xf]
    %v205 = vld [vmem:[#allocation2] sm:$0x3]
    %v206 = vpack.c.bf16 %v205, %v205
    %v211 = vunpack.c.l.b16 %v196
    %v212 = vunpack.c.l.b16 %v197
    %v213 = vunpack.c.l.b16 %v198
    %v214 = vunpack.c.l.b16 %v199
    %v215 = vpack.c.b16 %v212, %v211
    %v216 = vpack.c.b16 %v214, %v213
    %v220 = vsel %vm132, %v206, 0
    %222 = vmatpush.bf16.msra.mxu0 0
    %223 = vmatpush.bf16.msra.mxu0 0
    %224 = vmatpush.bf16.msra.mxu0 0
    %225 = vmatpush.bf16.msra.mxu0 0
    %226 = vmatpush.bf16.msra.mxu0 0
    %227 = vmatpush.bf16.msra.mxu0 0
    %228 = vmatpush.bf16.msra.mxu0 %v216
    %229 = vmatpush.bf16.msra.mxu0 %v215
    %230 = vmatmul.bf16.gmra.mxu0 %v220
    %v231 = vpop.f32.mrf.mxu0
    %v232 = vadd.f32 0.0, %v231
    %v233 = vpop.f32.mrf.mxu0
    %234 = vdwg.mxu0
    %v235 = vadd.f32 %v146, %v232
    %v236 = vld [vmem:[#allocation3] sm:$0x3]
    %v237 = vxor.u32 %v235, 2147483648
    %v238 = vmul.f32 %v237, 1.442695
    %v239 = vpow.pop %v238
    %v240 = vadd.f32 %v239, 1.0
    %v241 = vrcp.pop %v240
    %v242 = vmul.f32 %v240, %v241
    %v243 = vsub.f32 1.0, %v242
    %v244 = vmul.f32 %v241, %v243
    %v245 = vadd.f32 %v241, %v244
    %vm246 = vweird.f32 %v240
    %vm247 = vweird.f32 %v241
    %vm248 = vmor %vm246, %vm247
    %v249 = vsel %vm248, %v241, %v245
    %v250 = vand.u32 2147483647, %v240
    %vm251 = vcmp.eq.f32.partialorder %v250, 8.507059e+37
    %v252 = vand.u32 %v240, 2147483648
    %v253 = vor.u32 1.1754944e-38, %v252
    %v254 = vsel %vm251, %v253, %v249
    %v255 = vmul.f32 1.0, %v254
    %v256 = vtanh.pop %v235
    %258 = vrot.lane.b32.xlu0 %v236, 32
    %v259 = vpop.permute.xlu0 %258
    %v261 = vmul.f32 %v255, %v259
    %263 = vrot.lane.b32.xlu0 %v256, 64
    %v264 = vpop.permute.xlu0 %263
    %v266 = vmul.f32 %v255, %v264
    %268 = vrot.lane.b32.xlu0 %v266, 32
    %v269 = vpop.permute.xlu0 %268
    %v271 = vadd.f32 %v261, %v269
    %v272 = vtanh.pop %v271
    %274 = vrot.lane.b32.xlu0 %v272, 64
    %v275 = vpop.permute.xlu0 %274
    %v277 = vmul.f32 %v255, %v275
    %279 = vrot.lane.b32.xlu0 %v277, 32
    %v280 = vpop.permute.xlu0 %279
    %vm282 = vcmask 254976
    %283 = vst.msk [vmem:[#allocation2] sm:$0x3] %vm282, %v280
    %285 = vrot.lane.b32.xlu0 %v271, 96
    %v286 = vpop.permute.xlu0 %285
    %288 = vst.msk [vmem:[#allocation3] sm:$0x3] %vm282, %v286
    %289 = vst.msk [vmem:[#allocation14] sm:$0x3] %vm282, %v280
    %v290 = vld [vmem:[#allocation4] sm:$0x3]
    %v291 = vpack.c.bf16 %v290, %v290
    %v296 = vunpack.c.l.b16 %v201
    %v297 = vunpack.c.l.b16 %v202
    %v298 = vunpack.c.l.b16 %v203
    %v299 = vunpack.c.l.b16 %v204
    %v300 = vpack.c.b16 %v297, %v296
    %v301 = vpack.c.b16 %v299, %v298
    %v305 = vsel %vm132, %v291, 0
    %307 = vmatpush.bf16.msra.mxu0 0
    %308 = vmatpush.bf16.msra.mxu0 0
    %309 = vmatpush.bf16.msra.mxu0 0
    %310 = vmatpush.bf16.msra.mxu0 0
    %311 = vmatpush.bf16.msra.mxu0 0
    %312 = vmatpush.bf16.msra.mxu0 0
    %313 = vmatpush.bf16.msra.mxu0 %v301
    %314 = vmatpush.bf16.msra.mxu0 %v300
    %315 = vmatmul.bf16.gmra.mxu0 %v305
    %v316 = vpop.f32.mrf.mxu0
    %v317 = vadd.f32 0.0, %v316
    %v318 = vpop.f32.mrf.mxu0
    %319 = vdwg.mxu0
    %v321 = vrot.slane %v317, 2
    %v323 = vadd.f32 %v194, %v321
    %v324 = vld [vmem:[#allocation5] sm:$0x3]
    %v325 = vxor.u32 %v323, 2147483648
    %v326 = vmul.f32 %v325, 1.442695
    %v327 = vpow.pop %v326
    %v328 = vadd.f32 %v327, 1.0
    %v329 = vrcp.pop %v328
    %v330 = vmul.f32 %v328, %v329
    %v331 = vsub.f32 1.0, %v330
    %v332 = vmul.f32 %v329, %v331
    %v333 = vadd.f32 %v329, %v332
    %vm334 = vweird.f32 %v328
    %vm335 = vweird.f32 %v329
    %vm336 = vmor %vm334, %vm335
    %v337 = vsel %vm336, %v329, %v333
    %v338 = vand.u32 2147483647, %v328
    %vm339 = vcmp.eq.f32.partialorder %v338, 8.507059e+37
    %v340 = vand.u32 %v328, 2147483648
    %v341 = vor.u32 1.1754944e-38, %v340
    %v342 = vsel %vm339, %v341, %v337
    %v343 = vmul.f32 1.0, %v342
    %v344 = vtanh.pop %v323
    %v346 = vrot.slane %v324, 2
    %347 = vrot.lane.b32.xlu0 %v346, 32
    %v348 = vpop.permute.xlu0 %347
    %v350 = vmul.f32 %v343, %v348
    %352 = vrot.lane.b32.xlu0 %v344, 64
    %v353 = vpop.permute.xlu0 %352
    %v355 = vmul.f32 %v343, %v353
    %357 = vrot.lane.b32.xlu0 %v355, 32
    %v358 = vpop.permute.xlu0 %357
    %v360 = vadd.f32 %v350, %v358
    %v361 = vtanh.pop %v360
    %363 = vrot.lane.b32.xlu0 %v361, 64
    %v364 = vpop.permute.xlu0 %363
    %v366 = vmul.f32 %v343, %v364
    %368 = vrot.lane.b32.xlu0 %v366, 32
    %v369 = vpop.permute.xlu0 %368
    %vm371 = vcmask 261126
    %372 = vst.msk [vmem:[#allocation4 - $0x6] sm:$0xc0] %vm371, %v369
    %374 = vrot.lane.b32.xlu0 %v360, 96
    %v375 = vpop.permute.xlu0 %374
    %377 = vst.msk [vmem:[#allocation5 - $0x6] sm:$0xc0] %vm371, %v375
    %s378 = scalar_lea.vmem [#allocation15], 14
    %379 = vst.msk [vmem:[%s378 - $0x6] sm:$0xc0] %vm371, %v369
    %v380 = vld [vmem:[#allocation2] sm:$0x3]
    %v381 = vpack.c.bf16 %v380, %v380
    %v383 = vsel %vm132, %v381, 0
    %385 = vmatpush.bf16.msra.mxu0 0
    %386 = vmatpush.bf16.msra.mxu0 0
    %387 = vmatpush.bf16.msra.mxu0 0
    %388 = vmatpush.bf16.msra.mxu0 0
    %389 = vmatpush.bf16.msra.mxu0 0
    %390 = vmatpush.bf16.msra.mxu0 0
    %391 = vmatpush.bf16.msra.mxu0 %v216
    %392 = vmatpush.bf16.msra.mxu0 %v215
    %393 = vmatmul.bf16.gmra.mxu0 %v383
    %v394 = vpop.f32.mrf.mxu0
    %v395 = vadd.f32 0.0, %v394
    %v396 = vpop.f32.mrf.mxu0
    %397 = vdwg.mxu0
    %v399 = vrot.slane %v395, 6
    %v401 = vadd.f32 %v146, %v399
    %v402 = vld [vmem:[#allocation3] sm:$0x3]
    %v403 = vxor.u32 %v401, 2147483648
    %v404 = vmul.f32 %v403, 1.442695
    %v405 = vpow.pop %v404
    %v406 = vadd.f32 %v405, 1.0
    %v407 = vrcp.pop %v406
    %v408 = vmul.f32 %v406, %v407
    %v409 = vsub.f32 1.0, %v408
    %v410 = vmul.f32 %v407, %v409
    %v411 = vadd.f32 %v407, %v410
    %vm412 = vweird.f32 %v406
    %vm413 = vweird.f32 %v407
    %vm414 = vmor %vm412, %vm413
    %v415 = vsel %vm414, %v407, %v411
    %v416 = vand.u32 2147483647, %v406
    %vm417 = vcmp.eq.f32.partialorder %v416, 8.507059e+37
    %v418 = vand.u32 %v406, 2147483648
    %v419 = vor.u32 1.1754944e-38, %v418
    %v420 = vsel %vm417, %v419, %v415
    %v421 = vmul.f32 1.0, %v420
    %v422 = vtanh.pop %v401
    %v424 = vrot.slane %v402, 6
    %425 = vrot.lane.b32.xlu0 %v424, 32
    %v426 = vpop.permute.xlu0 %425
    %v428 = vmul.f32 %v421, %v426
    %430 = vrot.lane.b32.xlu0 %v422, 64
    %v431 = vpop.permute.xlu0 %430
    %v433 = vmul.f32 %v421, %v431
    %435 = vrot.lane.b32.xlu0 %v433, 32
    %v436 = vpop.permute.xlu0 %435
    %v438 = vadd.f32 %v428, %v436
    %v439 = vtanh.pop %v438
    %441 = vrot.lane.b32.xlu0 %v439, 64
    %v442 = vpop.permute.xlu0 %441
    %v444 = vmul.f32 %v421, %v442
    %446 = vrot.lane.b32.xlu0 %v444, 32
    %v447 = vpop.permute.xlu0 %446
    %vm449 = vcmask 257026
    %450 = vst.msk [vmem:[#allocation2 - $0x2] sm:$0xc] %vm449, %v447
    %452 = vrot.lane.b32.xlu0 %v438, 96
    %v453 = vpop.permute.xlu0 %452
    %455 = vst.msk [vmem:[#allocation3 - $0x2] sm:$0xc] %vm449, %v453
    %s456 = scalar_lea.vmem [#allocation14], 2
    %457 = vst.msk [vmem:[%s456 - $0x2] sm:$0xc] %vm449, %v447
    %v458 = vld [vmem:[#allocation4] sm:$0x3]
    %v459 = vpack.c.bf16 %v458, %v458
    %v461 = vsel %vm132, %v459, 0
    %463 = vmatpush.bf16.msra.mxu0 0
    %464 = vmatpush.bf16.msra.mxu0 0
    %465 = vmatpush.bf16.msra.mxu0 0
    %466 = vmatpush.bf16.msra.mxu0 0
    %467 = vmatpush.bf16.msra.mxu0 0
    %468 = vmatpush.bf16.msra.mxu0 0
    %469 = vmatpush.bf16.msra.mxu0 %v301
    %470 = vmatpush.bf16.msra.mxu0 %v300
    %471 = vmatmul.bf16.gmra.mxu0 %v461
    %v472 = vpop.f32.mrf.mxu0
    %v473 = vadd.f32 0.0, %v472
    %v474 = vpop.f32.mrf.mxu0
    %475 = vdwg.mxu0
    %v477 = vrot.slane %v473, 4
    %v479 = vadd.f32 %v194, %v477
    %v480 = vld [vmem:[#allocation5] sm:$0x3]
    %v481 = vxor.u32 %v479, 2147483648
    %v482 = vmul.f32 %v481, 1.442695
    %v483 = vpow.pop %v482
    %v484 = vadd.f32 %v483, 1.0
    %v485 = vrcp.pop %v484
    %v486 = vmul.f32 %v484, %v485
    %v487 = vsub.f32 1.0, %v486
    %v488 = vmul.f32 %v485, %v487
    %v489 = vadd.f32 %v485, %v488
    %vm490 = vweird.f32 %v484
    %vm491 = vweird.f32 %v485
    %vm492 = vmor %vm490, %vm491
    %v493 = vsel %vm492, %v485, %v489
    %v494 = vand.u32 2147483647, %v484
    %vm495 = vcmp.eq.f32.partialorder %v494, 8.507059e+37
    %v496 = vand.u32 %v484, 2147483648
    %v497 = vor.u32 1.1754944e-38, %v496
    %v498 = vsel %vm495, %v497, %v493
    %v499 = vmul.f32 1.0, %v498
    %v500 = vtanh.pop %v479
    %v502 = vrot.slane %v480, 4
    %503 = vrot.lane.b32.xlu0 %v502, 32
    %v504 = vpop.permute.xlu0 %503
    %v506 = vmul.f32 %v499, %v504
    %508 = vrot.lane.b32.xlu0 %v500, 64
    %v509 = vpop.permute.xlu0 %508
    %v511 = vmul.f32 %v499, %v509
    %513 = vrot.lane.b32.xlu0 %v511, 32
    %v514 = vpop.permute.xlu0 %513
    %v516 = vadd.f32 %v506, %v514
    %v517 = vtanh.pop %v516
    %519 = vrot.lane.b32.xlu0 %v517, 64
    %v520 = vpop.permute.xlu0 %519
    %v522 = vmul.f32 %v499, %v520
    %524 = vrot.lane.b32.xlu0 %v522, 32
    %v525 = vpop.permute.xlu0 %524
    %vm527 = vcmask 259076
    %528 = vst.msk [vmem:[#allocation4 - $0x4] sm:$0x30] %vm527, %v525
    %530 = vrot.lane.b32.xlu0 %v516, 96
    %v531 = vpop.permute.xlu0 %530
    %533 = vst.msk [vmem:[#allocation5 - $0x4] sm:$0x30] %vm527, %v531
    %s534 = scalar_lea.vmem [#allocation15], 12
    %535 = vst.msk [vmem:[%s534 - $0x4] sm:$0x30] %vm527, %v525
    %v536 = vld [vmem:[#allocation2] sm:$0x3]
    %v537 = vpack.c.bf16 %v536, %v536
    %v539 = vsel %vm132, %v537, 0
    %541 = vmatpush.bf16.msra.mxu0 0
    %542 = vmatpush.bf16.msra.mxu0 0
    %543 = vmatpush.bf16.msra.mxu0 0
    %544 = vmatpush.bf16.msra.mxu0 0
    %545 = vmatpush.bf16.msra.mxu0 0
    %546 = vmatpush.bf16.msra.mxu0 0
    %547 = vmatpush.bf16.msra.mxu0 %v216
    %548 = vmatpush.bf16.msra.mxu0 %v215
    %549 = vmatmul.bf16.gmra.mxu0 %v539
    %v550 = vpop.f32.mrf.mxu0
    %v551 = vadd.f32 0.0, %v550
    %v552 = vpop.f32.mrf.mxu0
    %553 = vdwg.mxu0
    %v555 = vrot.slane %v551, 4
    %v557 = vadd.f32 %v146, %v555
    %v558 = vld [vmem:[#allocation3] sm:$0x3]
    %v559 = vxor.u32 %v557, 2147483648
    %v560 = vmul.f32 %v559, 1.442695
    %v561 = vpow.pop %v560
    %v562 = vadd.f32 %v561, 1.0
    %v563 = vrcp.pop %v562
    %v564 = vmul.f32 %v562, %v563
    %v565 = vsub.f32 1.0, %v564
    %v566 = vmul.f32 %v563, %v565
    %v567 = vadd.f32 %v563, %v566
    %vm568 = vweird.f32 %v562
    %vm569 = vweird.f32 %v563
    %vm570 = vmor %vm568, %vm569
    %v571 = vsel %vm570, %v563, %v567
    %v572 = vand.u32 2147483647, %v562
    %vm573 = vcmp.eq.f32.partialorder %v572, 8.507059e+37
    %v574 = vand.u32 %v562, 2147483648
    %v575 = vor.u32 1.1754944e-38, %v574
    %v576 = vsel %vm573, %v575, %v571
    %v577 = vmul.f32 1.0, %v576
    %v578 = vtanh.pop %v557
    %v580 = vrot.slane %v558, 4
    %581 = vrot.lane.b32.xlu0 %v580, 32
    %v582 = vpop.permute.xlu0 %581
    %v584 = vmul.f32 %v577, %v582
    %586 = vrot.lane.b32.xlu0 %v578, 64
    %v587 = vpop.permute.xlu0 %586
    %v589 = vmul.f32 %v577, %v587
    %591 = vrot.lane.b32.xlu0 %v589, 32
    %v592 = vpop.permute.xlu0 %591
    %v594 = vadd.f32 %v584, %v592
    %v595 = vtanh.pop %v594
    %597 = vrot.lane.b32.xlu0 %v595, 64
    %v598 = vpop.permute.xlu0 %597
    %v600 = vmul.f32 %v577, %v598
    %602 = vrot.lane.b32.xlu0 %v600, 32
    %v603 = vpop.permute.xlu0 %602
    %605 = vst.msk [vmem:[#allocation2 - $0x4] sm:$0x30] %vm527, %v603
    %607 = vrot.lane.b32.xlu0 %v594, 96
    %v608 = vpop.permute.xlu0 %607
    %610 = vst.msk [vmem:[#allocation3 - $0x4] sm:$0x30] %vm527, %v608
    %s611 = scalar_lea.vmem [#allocation14], 4
    %612 = vst.msk [vmem:[%s611 - $0x4] sm:$0x30] %vm527, %v603
    %v613 = vld [vmem:[#allocation4] sm:$0x3]
    %v614 = vpack.c.bf16 %v613, %v613
    %v616 = vsel %vm132, %v614, 0
    %618 = vmatpush.bf16.msra.mxu0 0
    %619 = vmatpush.bf16.msra.mxu0 0
    %620 = vmatpush.bf16.msra.mxu0 0
    %621 = vmatpush.bf16.msra.mxu0 0
    %622 = vmatpush.bf16.msra.mxu0 0
    %623 = vmatpush.bf16.msra.mxu0 0
    %624 = vmatpush.bf16.msra.mxu0 %v301
    %625 = vmatpush.bf16.msra.mxu0 %v300
    %626 = vmatmul.bf16.gmra.mxu0 %v616
    %v627 = vpop.f32.mrf.mxu0
    %v628 = vadd.f32 0.0, %v627
    %v629 = vpop.f32.mrf.mxu0
    %630 = vdwg.mxu0
    %v632 = vrot.slane %v628, 6
    %v634 = vadd.f32 %v194, %v632
    %v635 = vld [vmem:[#allocation5] sm:$0x3]
    %v636 = vxor.u32 %v634, 2147483648
    %v637 = vmul.f32 %v636, 1.442695
    %v638 = vpow.pop %v637
    %v639 = vadd.f32 %v638, 1.0
    %v640 = vrcp.pop %v639
    %v641 = vmul.f32 %v639, %v640
    %v642 = vsub.f32 1.0, %v641
    %v643 = vmul.f32 %v640, %v642
    %v644 = vadd.f32 %v640, %v643
    %vm645 = vweird.f32 %v639
    %vm646 = vweird.f32 %v640
    %vm647 = vmor %vm645, %vm646
    %v648 = vsel %vm647, %v640, %v644
    %v649 = vand.u32 2147483647, %v639
    %vm650 = vcmp.eq.f32.partialorder %v649, 8.507059e+37
    %v651 = vand.u32 %v639, 2147483648
    %v652 = vor.u32 1.1754944e-38, %v651
    %v653 = vsel %vm650, %v652, %v648
    %v654 = vmul.f32 1.0, %v653
    %v655 = vtanh.pop %v634
    %v657 = vrot.slane %v635, 6
    %658 = vrot.lane.b32.xlu0 %v657, 32
    %v659 = vpop.permute.xlu0 %658
    %v661 = vmul.f32 %v654, %v659
    %663 = vrot.lane.b32.xlu0 %v655, 64
    %v664 = vpop.permute.xlu0 %663
    %v666 = vmul.f32 %v654, %v664
    %668 = vrot.lane.b32.xlu0 %v666, 32
    %v669 = vpop.permute.xlu0 %668
    %v671 = vadd.f32 %v661, %v669
    %v672 = vtanh.pop %v671
    %674 = vrot.lane.b32.xlu0 %v672, 64
    %v675 = vpop.permute.xlu0 %674
    %v677 = vmul.f32 %v654, %v675
    %679 = vrot.lane.b32.xlu0 %v677, 32
    %v680 = vpop.permute.xlu0 %679
    %682 = vst.msk [vmem:[#allocation4 - $0x2] sm:$0xc] %vm449, %v680
    %684 = vrot.lane.b32.xlu0 %v671, 96
    %v685 = vpop.permute.xlu0 %684
    %687 = vst.msk [vmem:[#allocation5 - $0x2] sm:$0xc] %vm449, %v685
    %s688 = scalar_lea.vmem [#allocation15], 10
    %689 = vst.msk [vmem:[%s688 - $0x2] sm:$0xc] %vm449, %v680
    %v690 = vld [vmem:[#allocation2] sm:$0x3]
    %v691 = vpack.c.bf16 %v690, %v690
    %v693 = vsel %vm132, %v691, 0
    %695 = vmatpush.bf16.msra.mxu0 0
    %696 = vmatpush.bf16.msra.mxu0 0
    %697 = vmatpush.bf16.msra.mxu0 0
    %698 = vmatpush.bf16.msra.mxu0 0
    %699 = vmatpush.bf16.msra.mxu0 0
    %700 = vmatpush.bf16.msra.mxu0 0
    %701 = vmatpush.bf16.msra.mxu0 %v216
    %702 = vmatpush.bf16.msra.mxu0 %v215
    %703 = vmatmul.bf16.gmra.mxu0 %v693
    %v704 = vpop.f32.mrf.mxu0
    %v705 = vadd.f32 0.0, %v704
    %v706 = vpop.f32.mrf.mxu0
    %707 = vdwg.mxu0
    %v709 = vrot.slane %v705, 2
    %v711 = vadd.f32 %v146, %v709
    %v712 = vld [vmem:[#allocation3] sm:$0x3]
    %v713 = vxor.u32 %v711, 2147483648
    %v714 = vmul.f32 %v713, 1.442695
    %v715 = vpow.pop %v714
    %v716 = vadd.f32 %v715, 1.0
    %v717 = vrcp.pop %v716
    %v718 = vmul.f32 %v716, %v717
    %v719 = vsub.f32 1.0, %v718
    %v720 = vmul.f32 %v717, %v719
    %v721 = vadd.f32 %v717, %v720
    %vm722 = vweird.f32 %v716
    %vm723 = vweird.f32 %v717
    %vm724 = vmor %vm722, %vm723
    %v725 = vsel %vm724, %v717, %v721
    %v726 = vand.u32 2147483647, %v716
    %vm727 = vcmp.eq.f32.partialorder %v726, 8.507059e+37
    %v728 = vand.u32 %v716, 2147483648
    %v729 = vor.u32 1.1754944e-38, %v728
    %v730 = vsel %vm727, %v729, %v725
    %v731 = vmul.f32 1.0, %v730
    %v732 = vtanh.pop %v711
    %v734 = vrot.slane %v712, 2
    %735 = vrot.lane.b32.xlu0 %v734, 32
    %v736 = vpop.permute.xlu0 %735
    %v738 = vmul.f32 %v731, %v736
    %740 = vrot.lane.b32.xlu0 %v732, 64
    %v741 = vpop.permute.xlu0 %740
    %v743 = vmul.f32 %v731, %v741
    %745 = vrot.lane.b32.xlu0 %v743, 32
    %v746 = vpop.permute.xlu0 %745
    %v748 = vadd.f32 %v738, %v746
    %v749 = vtanh.pop %v748
    %751 = vrot.lane.b32.xlu0 %v749, 64
    %v752 = vpop.permute.xlu0 %751
    %v754 = vmul.f32 %v731, %v752
    %756 = vrot.lane.b32.xlu0 %v754, 32
    %v757 = vpop.permute.xlu0 %756
    %759 = vst.msk [vmem:[#allocation2 - $0x6] sm:$0xc0] %vm371, %v757
    %761 = vrot.lane.b32.xlu0 %v748, 96
    %v762 = vpop.permute.xlu0 %761
    %764 = vst.msk [vmem:[#allocation3 - $0x6] sm:$0xc0] %vm371, %v762
    %s765 = scalar_lea.vmem [#allocation14], 6
    %766 = vst.msk [vmem:[%s765 - $0x6] sm:$0xc0] %vm371, %v757
    %v767 = vld [vmem:[#allocation4] sm:$0x3]
    %v768 = vpack.c.bf16 %v767, %v767
    %v770 = vsel %vm132, %v768, 0
    %772 = vmatpush.bf16.msra.mxu0 0
    %773 = vmatpush.bf16.msra.mxu0 0
    %774 = vmatpush.bf16.msra.mxu0 0
    %775 = vmatpush.bf16.msra.mxu0 0
    %776 = vmatpush.bf16.msra.mxu0 0
    %777 = vmatpush.bf16.msra.mxu0 0
    %778 = vmatpush.bf16.msra.mxu0 %v301
    %779 = vmatpush.bf16.msra.mxu0 %v300
    %780 = vmatmul.bf16.gmra.mxu0 %v770
    %v781 = vpop.f32.mrf.mxu0
    %v782 = vadd.f32 0.0, %v781
    %v783 = vpop.f32.mrf.mxu0
    %784 = vdwg.mxu0
    %v785 = vadd.f32 %v194, %v782
    %v786 = vld [vmem:[#allocation5] sm:$0x3]
    %v787 = vxor.u32 %v785, 2147483648
    %v788 = vmul.f32 %v787, 1.442695
    %v789 = vpow.pop %v788
    %v790 = vadd.f32 %v789, 1.0
    %v791 = vrcp.pop %v790
    %v792 = vmul.f32 %v790, %v791
    %v793 = vsub.f32 1.0, %v792
    %v794 = vmul.f32 %v791, %v793
    %v795 = vadd.f32 %v791, %v794
    %vm796 = vweird.f32 %v790
    %vm797 = vweird.f32 %v791
    %vm798 = vmor %vm796, %vm797
    %v799 = vsel %vm798, %v791, %v795
    %v800 = vand.u32 2147483647, %v790
    %vm801 = vcmp.eq.f32.partialorder %v800, 8.507059e+37
    %v802 = vand.u32 %v790, 2147483648
    %v803 = vor.u32 1.1754944e-38, %v802
    %v804 = vsel %vm801, %v803, %v799
    %v805 = vmul.f32 1.0, %v804
    %v806 = vtanh.pop %v785
    %808 = vrot.lane.b32.xlu0 %v786, 32
    %v809 = vpop.permute.xlu0 %808
    %v811 = vmul.f32 %v805, %v809
    %813 = vrot.lane.b32.xlu0 %v806, 64
    %v814 = vpop.permute.xlu0 %813
    %v816 = vmul.f32 %v805, %v814
    %818 = vrot.lane.b32.xlu0 %v816, 32
    %v819 = vpop.permute.xlu0 %818
    %v821 = vadd.f32 %v811, %v819
    %v822 = vtanh.pop %v821
    %824 = vrot.lane.b32.xlu0 %v822, 64
    %v825 = vpop.permute.xlu0 %824
    %v827 = vmul.f32 %v805, %v825
    %829 = vrot.lane.b32.xlu0 %v827, 32
    %v830 = vpop.permute.xlu0 %829
    %832 = vst.msk [vmem:[#allocation4] sm:$0x3] %vm282, %v830
    %834 = vrot.lane.b32.xlu0 %v821, 96
    %v835 = vpop.permute.xlu0 %834
    %837 = vst.msk [vmem:[#allocation5] sm:$0x3] %vm282, %v835
    %s838 = scalar_lea.vmem [#allocation15], 8
    %839 = vst.msk [vmem:[%s838] sm:$0x3] %vm282, %v830
    %v840 = vld [vmem:[#allocation2] sm:$0x3]
    %v841 = vpack.c.bf16 %v840, %v840
    %v843 = vsel %vm132, %v841, 0
    %845 = vmatpush.bf16.msra.mxu0 0
    %846 = vmatpush.bf16.msra.mxu0 0
    %847 = vmatpush.bf16.msra.mxu0 0
    %848 = vmatpush.bf16.msra.mxu0 0
    %849 = vmatpush.bf16.msra.mxu0 0
    %850 = vmatpush.bf16.msra.mxu0 0
    %851 = vmatpush.bf16.msra.mxu0 %v216
    %852 = vmatpush.bf16.msra.mxu0 %v215
    %853 = vmatmul.bf16.gmra.mxu0 %v843
    %v854 = vpop.f32.mrf.mxu0
    %v855 = vadd.f32 0.0, %v854
    %v856 = vpop.f32.mrf.mxu0
    %857 = vdwg.mxu0
    %v858 = vadd.f32 %v148, %v855
    %v859 = vld [vmem:[#allocation3] sm:$0x3]
    %v860 = vxor.u32 %v858, 2147483648
    %v861 = vmul.f32 %v860, 1.442695
    %v862 = vpow.pop %v861
    %v863 = vadd.f32 %v862, 1.0
    %v864 = vrcp.pop %v863
    %v865 = vmul.f32 %v863, %v864
    %v866 = vsub.f32 1.0, %v865
    %v867 = vmul.f32 %v864, %v866
    %v868 = vadd.f32 %v864, %v867
    %vm869 = vweird.f32 %v863
    %vm870 = vweird.f32 %v864
    %vm871 = vmor %vm869, %vm870
    %v872 = vsel %vm871, %v864, %v868
    %v873 = vand.u32 2147483647, %v863
    %vm874 = vcmp.eq.f32.partialorder %v873, 8.507059e+37
    %v875 = vand.u32 %v863, 2147483648
    %v876 = vor.u32 1.1754944e-38, %v875
    %v877 = vsel %vm874, %v876, %v872
    %v878 = vmul.f32 1.0, %v877
    %v879 = vtanh.pop %v858
    %881 = vrot.lane.b32.xlu0 %v859, 32
    %v882 = vpop.permute.xlu0 %881
    %v884 = vmul.f32 %v878, %v882
    %886 = vrot.lane.b32.xlu0 %v879, 64
    %v887 = vpop.permute.xlu0 %886
    %v889 = vmul.f32 %v878, %v887
    %891 = vrot.lane.b32.xlu0 %v889, 32
    %v892 = vpop.permute.xlu0 %891
    %v894 = vadd.f32 %v884, %v892
    %v895 = vtanh.pop %v894
    %897 = vrot.lane.b32.xlu0 %v895, 64
    %v898 = vpop.permute.xlu0 %897
    %v900 = vmul.f32 %v878, %v898
    %902 = vrot.lane.b32.xlu0 %v900, 32
    %v903 = vpop.permute.xlu0 %902
    %905 = vst.msk [vmem:[#allocation2] sm:$0x3] %vm282, %v903
    %907 = vrot.lane.b32.xlu0 %v894, 96
    %v908 = vpop.permute.xlu0 %907
    %910 = vst.msk [vmem:[#allocation3] sm:$0x3] %vm282, %v908
    %s911 = scalar_lea.vmem [#allocation14], 8
    %912 = vst.msk [vmem:[%s911] sm:$0x3] %vm282, %v903
    %v913 = vld [vmem:[#allocation4] sm:$0x3]
    %v914 = vpack.c.bf16 %v913, %v913
    %v916 = vsel %vm132, %v914, 0
    %918 = vmatpush.bf16.msra.mxu0 0
    %919 = vmatpush.bf16.msra.mxu0 0
    %920 = vmatpush.bf16.msra.mxu0 0
    %921 = vmatpush.bf16.msra.mxu0 0
    %922 = vmatpush.bf16.msra.mxu0 0
    %923 = vmatpush.bf16.msra.mxu0 0
    %924 = vmatpush.bf16.msra.mxu0 %v301
    %925 = vmatpush.bf16.msra.mxu0 %v300
    %926 = vmatmul.bf16.gmra.mxu0 %v916
    %v927 = vpop.f32.mrf.mxu0
    %v928 = vadd.f32 0.0, %v927
    %v929 = vpop.f32.mrf.mxu0
    %930 = vdwg.mxu0
    %v932 = vrot.slane %v928, 2
    %v934 = vadd.f32 %v192, %v932
    %v935 = vld [vmem:[#allocation5] sm:$0x3]
    %v936 = vxor.u32 %v934, 2147483648
    %v937 = vmul.f32 %v936, 1.442695
    %v938 = vpow.pop %v937
    %v939 = vadd.f32 %v938, 1.0
    %v940 = vrcp.pop %v939
    %v941 = vmul.f32 %v939, %v940
    %v942 = vsub.f32 1.0, %v941
    %v943 = vmul.f32 %v940, %v942
    %v944 = vadd.f32 %v940, %v943
    %vm945 = vweird.f32 %v939
    %vm946 = vweird.f32 %v940
    %vm947 = vmor %vm945, %vm946
    %v948 = vsel %vm947, %v940, %v944
    %v949 = vand.u32 2147483647, %v939
    %vm950 = vcmp.eq.f32.partialorder %v949, 8.507059e+37
    %v951 = vand.u32 %v939, 2147483648
    %v952 = vor.u32 1.1754944e-38, %v951
    %v953 = vsel %vm950, %v952, %v948
    %v954 = vmul.f32 1.0, %v953
    %v955 = vtanh.pop %v934
    %v957 = vrot.slane %v935, 2
    %958 = vrot.lane.b32.xlu0 %v957, 32
    %v959 = vpop.permute.xlu0 %958
    %v961 = vmul.f32 %v954, %v959
    %963 = vrot.lane.b32.xlu0 %v955, 64
    %v964 = vpop.permute.xlu0 %963
    %v966 = vmul.f32 %v954, %v964
    %968 = vrot.lane.b32.xlu0 %v966, 32
    %v969 = vpop.permute.xlu0 %968
    %v971 = vadd.f32 %v961, %v969
    %v972 = vtanh.pop %v971
    %974 = vrot.lane.b32.xlu0 %v972, 64
    %v975 = vpop.permute.xlu0 %974
    %v977 = vmul.f32 %v954, %v975
    %979 = vrot.lane.b32.xlu0 %v977, 32
    %v980 = vpop.permute.xlu0 %979
    %982 = vst.msk [vmem:[#allocation4 - $0x6] sm:$0xc0] %vm371, %v980
    %984 = vrot.lane.b32.xlu0 %v971, 96
    %v985 = vpop.permute.xlu0 %984
    %987 = vst.msk [vmem:[#allocation5 - $0x6] sm:$0xc0] %vm371, %v985
    %s988 = scalar_lea.vmem [#allocation15], 6
    %989 = vst.msk [vmem:[%s988 - $0x6] sm:$0xc0] %vm371, %v980
    %v990 = vld [vmem:[#allocation2] sm:$0x3]
    %v991 = vpack.c.bf16 %v990, %v990
    %v993 = vsel %vm132, %v991, 0
    %995 = vmatpush.bf16.msra.mxu0 0
    %996 = vmatpush.bf16.msra.mxu0 0
    %997 = vmatpush.bf16.msra.mxu0 0
    %998 = vmatpush.bf16.msra.mxu0 0
    %999 = vmatpush.bf16.msra.mxu0 0
    %1000 = vmatpush.bf16.msra.mxu0 0
    %1001 = vmatpush.bf16.msra.mxu0 %v216
    %1002 = vmatpush.bf16.msra.mxu0 %v215
    %1003 = vmatmul.bf16.gmra.mxu0 %v993
    %v1004 = vpop.f32.mrf.mxu0
    %v1005 = vadd.f32 0.0, %v1004
    %v1006 = vpop.f32.mrf.mxu0
    %1007 = vdwg.mxu0
    %v1009 = vrot.slane %v1005, 6
    %v1011 = vadd.f32 %v148, %v1009
    %v1012 = vld [vmem:[#allocation3] sm:$0x3]
    %v1013 = vxor.u32 %v1011, 2147483648
    %v1014 = vmul.f32 %v1013, 1.442695
    %v1015 = vpow.pop %v1014
    %v1016 = vadd.f32 %v1015, 1.0
    %v1017 = vrcp.pop %v1016
    %v1018 = vmul.f32 %v1016, %v1017
    %v1019 = vsub.f32 1.0, %v1018
    %v1020 = vmul.f32 %v1017, %v1019
    %v1021 = vadd.f32 %v1017, %v1020
    %vm1022 = vweird.f32 %v1016
    %vm1023 = vweird.f32 %v1017
    %vm1024 = vmor %vm1022, %vm1023
    %v1025 = vsel %vm1024, %v1017, %v1021
    %v1026 = vand.u32 2147483647, %v1016
    %vm1027 = vcmp.eq.f32.partialorder %v1026, 8.507059e+37
    %v1028 = vand.u32 %v1016, 2147483648
    %v1029 = vor.u32 1.1754944e-38, %v1028
    %v1030 = vsel %vm1027, %v1029, %v1025
    %v1031 = vmul.f32 1.0, %v1030
    %v1032 = vtanh.pop %v1011
    %v1034 = vrot.slane %v1012, 6
    %1035 = vrot.lane.b32.xlu0 %v1034, 32
    %v1036 = vpop.permute.xlu0 %1035
    %v1038 = vmul.f32 %v1031, %v1036
    %1040 = vrot.lane.b32.xlu0 %v1032, 64
    %v1041 = vpop.permute.xlu0 %1040
    %v1043 = vmul.f32 %v1031, %v1041
    %1045 = vrot.lane.b32.xlu0 %v1043, 32
    %v1046 = vpop.permute.xlu0 %1045
    %v1048 = vadd.f32 %v1038, %v1046
    %v1049 = vtanh.pop %v1048
    %1051 = vrot.lane.b32.xlu0 %v1049, 64
    %v1052 = vpop.permute.xlu0 %1051
    %v1054 = vmul.f32 %v1031, %v1052
    %1056 = vrot.lane.b32.xlu0 %v1054, 32
    %v1057 = vpop.permute.xlu0 %1056
    %1059 = vst.msk [vmem:[#allocation2 - $0x2] sm:$0xc] %vm449, %v1057
    %1061 = vrot.lane.b32.xlu0 %v1048, 96
    %v1062 = vpop.permute.xlu0 %1061
    %1064 = vst.msk [vmem:[#allocation3 - $0x2] sm:$0xc] %vm449, %v1062
    %s1065 = scalar_lea.vmem [#allocation14], 10
    %1066 = vst.msk [vmem:[%s1065 - $0x2] sm:$0xc] %vm449, %v1057
    %v1067 = vld [vmem:[#allocation4] sm:$0x3]
    %v1068 = vpack.c.bf16 %v1067, %v1067
    %v1070 = vsel %vm132, %v1068, 0
    %1072 = vmatpush.bf16.msra.mxu0 0
    %1073 = vmatpush.bf16.msra.mxu0 0
    %1074 = vmatpush.bf16.msra.mxu0 0
    %1075 = vmatpush.bf16.msra.mxu0 0
    %1076 = vmatpush.bf16.msra.mxu0 0
    %1077 = vmatpush.bf16.msra.mxu0 0
    %1078 = vmatpush.bf16.msra.mxu0 %v301
    %1079 = vmatpush.bf16.msra.mxu0 %v300
    %1080 = vmatmul.bf16.gmra.mxu0 %v1070
    %v1081 = vpop.f32.mrf.mxu0
    %v1082 = vadd.f32 0.0, %v1081
    %v1083 = vpop.f32.mrf.mxu0
    %1084 = vdwg.mxu0
    %v1086 = vrot.slane %v1082, 4
    %v1088 = vadd.f32 %v192, %v1086
    %v1089 = vld [vmem:[#allocation5] sm:$0x3]
    %v1090 = vxor.u32 %v1088, 2147483648
    %v1091 = vmul.f32 %v1090, 1.442695
    %v1092 = vpow.pop %v1091
    %v1093 = vadd.f32 %v1092, 1.0
    %v1094 = vrcp.pop %v1093
    %v1095 = vmul.f32 %v1093, %v1094
    %v1096 = vsub.f32 1.0, %v1095
    %v1097 = vmul.f32 %v1094, %v1096
    %v1098 = vadd.f32 %v1094, %v1097
    %vm1099 = vweird.f32 %v1093
    %vm1100 = vweird.f32 %v1094
    %vm1101 = vmor %vm1099, %vm1100
    %v1102 = vsel %vm1101, %v1094, %v1098
    %v1103 = vand.u32 2147483647, %v1093
    %vm1104 = vcmp.eq.f32.partialorder %v1103, 8.507059e+37
    %v1105 = vand.u32 %v1093, 2147483648
    %v1106 = vor.u32 1.1754944e-38, %v1105
    %v1107 = vsel %vm1104, %v1106, %v1102
    %v1108 = vmul.f32 1.0, %v1107
    %v1109 = vtanh.pop %v1088
    %v1111 = vrot.slane %v1089, 4
    %1112 = vrot.lane.b32.xlu0 %v1111, 32
    %v1113 = vpop.permute.xlu0 %1112
    %v1115 = vmul.f32 %v1108, %v1113
    %1117 = vrot.lane.b32.xlu0 %v1109, 64
    %v1118 = vpop.permute.xlu0 %1117
    %v1120 = vmul.f32 %v1108, %v1118
    %1122 = vrot.lane.b32.xlu0 %v1120, 32
    %v1123 = vpop.permute.xlu0 %1122
    %v1125 = vadd.f32 %v1115, %v1123
    %v1126 = vtanh.pop %v1125
    %1128 = vrot.lane.b32.xlu0 %v1126, 64
    %v1129 = vpop.permute.xlu0 %1128
    %v1131 = vmul.f32 %v1108, %v1129
    %1133 = vrot.lane.b32.xlu0 %v1131, 32
    %v1134 = vpop.permute.xlu0 %1133
    %1136 = vst.msk [vmem:[#allocation4 - $0x4] sm:$0x30] %vm527, %v1134
    %1138 = vrot.lane.b32.xlu0 %v1125, 96
    %v1139 = vpop.permute.xlu0 %1138
    %1141 = vst.msk [vmem:[#allocation5 - $0x4] sm:$0x30] %vm527, %v1139
    %s1142 = scalar_lea.vmem [#allocation15], 4
    %1143 = vst.msk [vmem:[%s1142 - $0x4] sm:$0x30] %vm527, %v1134
    %v1144 = vld [vmem:[#allocation2] sm:$0x3]
    %v1145 = vpack.c.bf16 %v1144, %v1144
    %v1147 = vsel %vm132, %v1145, 0
    %1149 = vmatpush.bf16.msra.mxu0 0
    %1150 = vmatpush.bf16.msra.mxu0 0
    %1151 = vmatpush.bf16.msra.mxu0 0
    %1152 = vmatpush.bf16.msra.mxu0 0
    %1153 = vmatpush.bf16.msra.mxu0 0
    %1154 = vmatpush.bf16.msra.mxu0 0
    %1155 = vmatpush.bf16.msra.mxu0 %v216
    %1156 = vmatpush.bf16.msra.mxu0 %v215
    %1157 = vmatmul.bf16.gmra.mxu0 %v1147
    %v1158 = vpop.f32.mrf.mxu0
    %v1159 = vadd.f32 0.0, %v1158
    %v1160 = vpop.f32.mrf.mxu0
    %1161 = vdwg.mxu0
    %v1163 = vrot.slane %v1159, 4
    %v1165 = vadd.f32 %v148, %v1163
    %v1166 = vld [vmem:[#allocation3] sm:$0x3]
    %v1167 = vxor.u32 %v1165, 2147483648
    %v1168 = vmul.f32 %v1167, 1.442695
    %v1169 = vpow.pop %v1168
    %v1170 = vadd.f32 %v1169, 1.0
    %v1171 = vrcp.pop %v1170
    %v1172 = vmul.f32 %v1170, %v1171
    %v1173 = vsub.f32 1.0, %v1172
    %v1174 = vmul.f32 %v1171, %v1173
    %v1175 = vadd.f32 %v1171, %v1174
    %vm1176 = vweird.f32 %v1170
    %vm1177 = vweird.f32 %v1171
    %vm1178 = vmor %vm1176, %vm1177
    %v1179 = vsel %vm1178, %v1171, %v1175
    %v1180 = vand.u32 2147483647, %v1170
    %vm1181 = vcmp.eq.f32.partialorder %v1180, 8.507059e+37
    %v1182 = vand.u32 %v1170, 2147483648
    %v1183 = vor.u32 1.1754944e-38, %v1182
    %v1184 = vsel %vm1181, %v1183, %v1179
    %v1185 = vmul.f32 1.0, %v1184
    %v1186 = vtanh.pop %v1165
    %v1188 = vrot.slane %v1166, 4
    %1189 = vrot.lane.b32.xlu0 %v1188, 32
    %v1190 = vpop.permute.xlu0 %1189
    %v1192 = vmul.f32 %v1185, %v1190
    %1194 = vrot.lane.b32.xlu0 %v1186, 64
    %v1195 = vpop.permute.xlu0 %1194
    %v1197 = vmul.f32 %v1185, %v1195
    %1199 = vrot.lane.b32.xlu0 %v1197, 32
    %v1200 = vpop.permute.xlu0 %1199
    %v1202 = vadd.f32 %v1192, %v1200
    %v1203 = vtanh.pop %v1202
    %1205 = vrot.lane.b32.xlu0 %v1203, 64
    %v1206 = vpop.permute.xlu0 %1205
    %v1208 = vmul.f32 %v1185, %v1206
    %1210 = vrot.lane.b32.xlu0 %v1208, 32
    %v1211 = vpop.permute.xlu0 %1210
    %1213 = vst.msk [vmem:[#allocation2 - $0x4] sm:$0x30] %vm527, %v1211
    %1215 = vrot.lane.b32.xlu0 %v1202, 96
    %v1216 = vpop.permute.xlu0 %1215
    %1218 = vst.msk [vmem:[#allocation3 - $0x4] sm:$0x30] %vm527, %v1216
    %s1219 = scalar_lea.vmem [#allocation14], 12
    %1220 = vst.msk [vmem:[%s1219 - $0x4] sm:$0x30] %vm527, %v1211
    %v1221 = vld [vmem:[#allocation4] sm:$0x3]
    %v1222 = vpack.c.bf16 %v1221, %v1221
    %v1224 = vsel %vm132, %v1222, 0
    %1226 = vmatpush.bf16.msra.mxu0 0
    %1227 = vmatpush.bf16.msra.mxu0 0
    %1228 = vmatpush.bf16.msra.mxu0 0
    %1229 = vmatpush.bf16.msra.mxu0 0
    %1230 = vmatpush.bf16.msra.mxu0 0
    %1231 = vmatpush.bf16.msra.mxu0 0
    %1232 = vmatpush.bf16.msra.mxu0 %v301
    %1233 = vmatpush.bf16.msra.mxu0 %v300
    %1234 = vmatmul.bf16.gmra.mxu0 %v1224
    %v1235 = vpop.f32.mrf.mxu0
    %v1236 = vadd.f32 0.0, %v1235
    %v1237 = vpop.f32.mrf.mxu0
    %1238 = vdwg.mxu0
    %v1240 = vrot.slane %v1236, 6
    %v1242 = vadd.f32 %v192, %v1240
    %v1243 = vld [vmem:[#allocation5] sm:$0x3]
    %v1244 = vxor.u32 %v1242, 2147483648
    %v1245 = vmul.f32 %v1244, 1.442695
    %v1246 = vpow.pop %v1245
    %v1247 = vadd.f32 %v1246, 1.0
    %v1248 = vrcp.pop %v1247
    %v1249 = vmul.f32 %v1247, %v1248
    %v1250 = vsub.f32 1.0, %v1249
    %v1251 = vmul.f32 %v1248, %v1250
    %v1252 = vadd.f32 %v1248, %v1251
    %vm1253 = vweird.f32 %v1247
    %vm1254 = vweird.f32 %v1248
    %vm1255 = vmor %vm1253, %vm1254
    %v1256 = vsel %vm1255, %v1248, %v1252
    %v1257 = vand.u32 2147483647, %v1247
    %vm1258 = vcmp.eq.f32.partialorder %v1257, 8.507059e+37
    %v1259 = vand.u32 %v1247, 2147483648
    %v1260 = vor.u32 1.1754944e-38, %v1259
    %v1261 = vsel %vm1258, %v1260, %v1256
    %v1262 = vmul.f32 1.0, %v1261
    %v1263 = vtanh.pop %v1242
    %v1265 = vrot.slane %v1243, 6
    %1266 = vrot.lane.b32.xlu0 %v1265, 32
    %v1267 = vpop.permute.xlu0 %1266
    %v1269 = vmul.f32 %v1262, %v1267
    %1271 = vrot.lane.b32.xlu0 %v1263, 64
    %v1272 = vpop.permute.xlu0 %1271
    %v1274 = vmul.f32 %v1262, %v1272
    %1276 = vrot.lane.b32.xlu0 %v1274, 32
    %v1277 = vpop.permute.xlu0 %1276
    %v1279 = vadd.f32 %v1269, %v1277
    %v1280 = vtanh.pop %v1279
    %1282 = vrot.lane.b32.xlu0 %v1280, 64
    %v1283 = vpop.permute.xlu0 %1282
    %v1285 = vmul.f32 %v1262, %v1283
    %1287 = vrot.lane.b32.xlu0 %v1285, 32
    %v1288 = vpop.permute.xlu0 %1287
    %1290 = vst.msk [vmem:[#allocation4 - $0x2] sm:$0xc] %vm449, %v1288
    %1292 = vrot.lane.b32.xlu0 %v1279, 96
    %v1293 = vpop.permute.xlu0 %1292
    %1295 = vst.msk [vmem:[#allocation5 - $0x2] sm:$0xc] %vm449, %v1293
    %s1296 = scalar_lea.vmem [#allocation15], 2
    %1297 = vst.msk [vmem:[%s1296 - $0x2] sm:$0xc] %vm449, %v1288
    %v1298 = vld [vmem:[#allocation2] sm:$0x3]
    %v1299 = vpack.c.bf16 %v1298, %v1298
    %v1301 = vsel %vm132, %v1299, 0
    %1303 = vmatpush.bf16.msra.mxu0 0
    %1304 = vmatpush.bf16.msra.mxu0 0
    %1305 = vmatpush.bf16.msra.mxu0 0
    %1306 = vmatpush.bf16.msra.mxu0 0
    %1307 = vmatpush.bf16.msra.mxu0 0
    %1308 = vmatpush.bf16.msra.mxu0 0
    %1309 = vmatpush.bf16.msra.mxu0 %v216
    %1310 = vmatpush.bf16.msra.mxu0 %v215
    %1311 = vmatmul.bf16.gmra.mxu0 %v1301
    %v1312 = vpop.f32.mrf.mxu0
    %v1313 = vadd.f32 0.0, %v1312
    %v1314 = vpop.f32.mrf.mxu0
    %1315 = vdwg.mxu0
    %v1317 = vrot.slane %v1313, 2
    %v1319 = vadd.f32 %v148, %v1317
    %v1320 = vld [vmem:[#allocation3] sm:$0x3]
    %v1321 = vxor.u32 %v1319, 2147483648
    %v1322 = vmul.f32 %v1321, 1.442695
    %v1323 = vpow.pop %v1322
    %v1324 = vadd.f32 %v1323, 1.0
    %v1325 = vrcp.pop %v1324
    %v1326 = vmul.f32 %v1324, %v1325
    %v1327 = vsub.f32 1.0, %v1326
    %v1328 = vmul.f32 %v1325, %v1327
    %v1329 = vadd.f32 %v1325, %v1328
    %vm1330 = vweird.f32 %v1324
    %vm1331 = vweird.f32 %v1325
    %vm1332 = vmor %vm1330, %vm1331
    %v1333 = vsel %vm1332, %v1325, %v1329
    %v1334 = vand.u32 2147483647, %v1324
    %vm1335 = vcmp.eq.f32.partialorder %v1334, 8.507059e+37
    %v1336 = vand.u32 %v1324, 2147483648
    %v1337 = vor.u32 1.1754944e-38, %v1336
    %v1338 = vsel %vm1335, %v1337, %v1333
    %v1339 = vmul.f32 1.0, %v1338
    %v1340 = vtanh.pop %v1319
    %v1342 = vrot.slane %v1320, 2
    %1343 = vrot.lane.b32.xlu0 %v1342, 32
    %v1344 = vpop.permute.xlu0 %1343
    %v1346 = vmul.f32 %v1339, %v1344
    %1348 = vrot.lane.b32.xlu0 %v1340, 64
    %v1349 = vpop.permute.xlu0 %1348
    %v1351 = vmul.f32 %v1339, %v1349
    %1353 = vrot.lane.b32.xlu0 %v1351, 32
    %v1354 = vpop.permute.xlu0 %1353
    %v1356 = vadd.f32 %v1346, %v1354
    %v1357 = vtanh.pop %v1356
    %1359 = vrot.lane.b32.xlu0 %v1357, 64
    %v1360 = vpop.permute.xlu0 %1359
    %v1362 = vmul.f32 %v1339, %v1360
    %1364 = vrot.lane.b32.xlu0 %v1362, 32
    %v1365 = vpop.permute.xlu0 %1364
    %1367 = vst.msk [vmem:[#allocation2 - $0x6] sm:$0xc0] %vm371, %v1365
    %1369 = vrot.lane.b32.xlu0 %v1356, 96
    %v1370 = vpop.permute.xlu0 %1369
    %1372 = vst.msk [vmem:[#allocation3 - $0x6] sm:$0xc0] %vm371, %v1370
    %s1373 = scalar_lea.vmem [#allocation14], 14
    %1374 = vst.msk [vmem:[%s1373 - $0x6] sm:$0xc0] %vm371, %v1365
    %v1375 = vld [vmem:[#allocation4] sm:$0x3]
    %v1376 = vpack.c.bf16 %v1375, %v1375
    %v1378 = vsel %vm132, %v1376, 0
    %1380 = vmatpush.bf16.msra.mxu0 0
    %1381 = vmatpush.bf16.msra.mxu0 0
    %1382 = vmatpush.bf16.msra.mxu0 0
    %1383 = vmatpush.bf16.msra.mxu0 0
    %1384 = vmatpush.bf16.msra.mxu0 0
    %1385 = vmatpush.bf16.msra.mxu0 0
    %1386 = vmatpush.bf16.msra.mxu0 %v301
    %1387 = vmatpush.bf16.msra.mxu0 %v300
    %1388 = vmatmul.bf16.gmra.mxu0 %v1378
    %v1389 = vpop.f32.mrf.mxu0
    %v1390 = vadd.f32 0.0, %v1389
    %v1391 = vpop.f32.mrf.mxu0
    %1392 = vdwg.mxu0
    %v1393 = vadd.f32 %v192, %v1390
    %v1394 = vld [vmem:[#allocation5] sm:$0x3]
    %v1395 = vxor.u32 %v1393, 2147483648
    %v1396 = vmul.f32 %v1395, 1.442695
    %v1397 = vpow.pop %v1396
    %v1398 = vadd.f32 %v1397, 1.0
    %v1399 = vrcp.pop %v1398
    %v1400 = vmul.f32 %v1398, %v1399
    %v1401 = vsub.f32 1.0, %v1400
    %v1402 = vmul.f32 %v1399, %v1401
    %v1403 = vadd.f32 %v1399, %v1402
    %vm1404 = vweird.f32 %v1398
    %vm1405 = vweird.f32 %v1399
    %vm1406 = vmor %vm1404, %vm1405
    %v1407 = vsel %vm1406, %v1399, %v1403
    %v1408 = vand.u32 2147483647, %v1398
    %vm1409 = vcmp.eq.f32.partialorder %v1408, 8.507059e+37
    %v1410 = vand.u32 %v1398, 2147483648
    %v1411 = vor.u32 1.1754944e-38, %v1410
    %v1412 = vsel %vm1409, %v1411, %v1407
    %v1413 = vmul.f32 1.0, %v1412
    %v1414 = vtanh.pop %v1393
    %1416 = vrot.lane.b32.xlu0 %v1394, 32
    %v1417 = vpop.permute.xlu0 %1416
    %v1419 = vmul.f32 %v1413, %v1417
    %1421 = vrot.lane.b32.xlu0 %v1414, 64
    %v1422 = vpop.permute.xlu0 %1421
    %v1424 = vmul.f32 %v1413, %v1422
    %1426 = vrot.lane.b32.xlu0 %v1424, 32
    %v1427 = vpop.permute.xlu0 %1426
    %v1429 = vadd.f32 %v1419, %v1427
    %v1430 = vtanh.pop %v1429
    %1432 = vrot.lane.b32.xlu0 %v1430, 64
    %v1433 = vpop.permute.xlu0 %1432
    %v1435 = vmul.f32 %v1413, %v1433
    %1437 = vrot.lane.b32.xlu0 %v1435, 32
    %v1438 = vpop.permute.xlu0 %1437
    %1440 = vst.msk [vmem:[#allocation4] sm:$0x3] %vm282, %v1438
    %1442 = vrot.lane.b32.xlu0 %v1429, 96
    %v1443 = vpop.permute.xlu0 %1442
    %1445 = vst.msk [vmem:[#allocation5] sm:$0x3] %vm282, %v1443
    %1446 = vst.msk [vmem:[#allocation15] sm:$0x3] %vm282, %v1438
    // Predicated region
    $region42: #{tpu_custom_call.1} parent=1 // pred_check
      _
    $region43: #{tpu_custom_call.1} parent=1 // pred_check_branch
      %1448 = sbr.rel (0) target = $region45
    $region44: #{tpu_custom_call.1} parent=1 // pred_region
      %1450 = vsyncadd [#allocation8], 0
      %s1451 = sshll.u32 [#allocation14], 4
      %s1452 = int_to_ptr.vmem [resolvable:$true] %s1451
      %s1453 = sshll.u32 %s5, 4
      %s1454 = int_to_ptr.hbm [resolvable:$true] %s1453
      %1459 = dma.vmem_to_hbm [thread:$0]  %s1452, 256, %s1454, [#allocation8], 32, 32, 2
    $region45: #{tpu_custom_call.1} parent=1 // pred_fallthru
      _
    // Predicated region
    $region46: #{tpu_custom_call.1} parent=1 // pred_check
      _
    $region47: #{tpu_custom_call.1} parent=1 // pred_check_branch
      %1461 = sbr.rel (0) target = $region49
    $region48: #{tpu_custom_call.1} parent=1 // pred_region
      %s1462 = ssub.s32 0, 0
      %s1463 = smul.u32 8, %s1462
      %1465 = vsyncadd [#allocation16], 0
      %s1466 = smul.addr %s1463, 2
      %s1467 = scalar_lea.hbm %s6, %s1466
      %s1468 = sshll.u32 [#allocation15], 4
      %s1469 = int_to_ptr.vmem [resolvable:$true] %s1468
      %s1470 = sshll.u32 %s1467, 4
      %s1471 = int_to_ptr.hbm [resolvable:$true] %s1470
      %1476 = dma.vmem_to_hbm [thread:$0]  %s1469, 256, %s1471, [#allocation16], 32, 32, 2
    $region49: #{tpu_custom_call.1} parent=1 // pred_fallthru
      _
    // Predicated region
    $region50: #{tpu_custom_call.1} parent=1 // pred_check
      _
    $region51: #{tpu_custom_call.1} parent=1 // pred_check_branch
      %1478 = sbr.rel (0) target = $region53
    $region52: #{tpu_custom_call.1} parent=1 // pred_region
      %1480 = dma.done [#allocation8], 256
    $region53: #{tpu_custom_call.1} parent=1 // pred_fallthru
      _
    // Predicated region
    $region54: #{tpu_custom_call.1} parent=1 // pred_check
      _
    $region55: #{tpu_custom_call.1} parent=1 // pred_check_branch
      %1482 = sbr.rel (0) target = $region57
    $region56: #{tpu_custom_call.1} parent=1 // pred_region
      %1484 = dma.done [#allocation16], 256
    $region57: #{tpu_custom_call.1} parent=1 // pred_fallthru
      _
    %1485 = vsyncpa [#allocation7], 1
    %1486 = vsyncpa [#allocation10], 1
    %1487 = vsyncpa [#allocation13], 1
    %1488 = vsyncpa [#allocation8], 1
    %1489 = vsyncpa [#allocation16], 1

</llo_original>
